<compile_context>
chip_gen: v7x
topology: tpu7x:2x2x1
jax: 0.10.0
libtpu: 0.0.40
codegen_flags: <defaults>
</compile_context>

<pallas_src>
import functools

import jax
import jax.numpy as jnp
from jax import lax
from jax.experimental import pallas as pl
from jax.experimental.pallas import tpu as pltpu

BN_EPS = 1e-5
LEAKY_SLOPE = 0.1
LANE = 128


def _round_up(x, m):
    return (x + m - 1) // m * m


def _vmem_capacity_bytes():
    try:
        return int(pltpu.get_tpu_info().vmem_capacity_bytes)
    except Exception:
        return 64 * 1024 * 1024  # conservative (v7x per-core VMEM)


def _pick_row_tile(oh, ow, cpad, c_y, budget_bytes):
    """Largest divisor of OH whose f32 accumulator + y blocks fit the per-step budget."""
    per_row = ow * (3 * cpad * 4 + 2 * c_y * 2)
    toh = 1
    for t in range(1, oh + 1):
        if oh % t == 0 and t * per_row <= budget_bytes:
            toh = t
    return toh


def _conv_stats_kernel(x_ref, w_ref, y_ref, sum_ref, ssq_ref, *, k, s, qh, toh):
    """Conv for TOH output rows of one image + partial BN stats.

    x_ref   : (s*qh, OW, K*Cin) bf16  kj taps concatenated along channels; rows
                                      regrouped by residue mod s (plane r at [r*qh,...))
    w_ref   : (K, K*Cin, Cpad)  bf16  fully resident weight slab
    y_ref   : (TOH, OW, c_y)    bf16  conv output (narrow channel width)
    sum_ref : (1, Cpad)         f32   partial sum of y over this tile
    ssq_ref : (1, Cpad)         f32   partial sum of y*y over this tile
    """
    rt = pl.program_id(1)
    ow = y_ref.shape[1]
    c_y = y_ref.shape[2]
    kcin = w_ref.shape[1]
    cpad = w_ref.shape[2]
    m = toh * ow
    q0 = rt * toh

    acc = jnp.zeros((m, cpad), jnp.float32)
    for ki in range(k):  # unrolled in-kernel contraction over kernel rows
        row0 = (ki % s) * qh + (ki // s)           # static plane offset
        win = x_ref[pl.ds(row0 + q0, toh), :, :]   # (TOH, OW, K*Cin), contiguous rows
        acc = acc + jnp.dot(win.reshape(m, kcin), w_ref[ki],
                            preferred_element_type=jnp.float32)

    # BN partial stats from the f32 accumulator (before the bf16 store).
    # TODO(synk): E[x^2]-E[x]^2 is cancellation-prone for large-mean activations;
    #   a shifted / two-pass reduction would be more robust for real layers.
    sum_ref[...] = jnp.sum(acc, axis=0, keepdims=True)
    ssq_ref[...] = jnp.sum(acc * acc, axis=0, keepdims=True)

    y_ref[...] = acc[:, :c_y].reshape(toh, ow, c_y).astype(y_ref.dtype)


def _bn_act_kernel(y_ref, a_ref, b_ref, o_ref):
    """Folded BatchNorm affine + LeakyReLU(0.1): out = max(y*a+b, 0.1*(y*a+b))."""
    t = y_ref[...].astype(jnp.float32) * a_ref[...] + b_ref[...]
    o_ref[...] = jnp.maximum(t, LEAKY_SLOPE * t)


@functools.partial(jax.jit, static_argnames=("kernel_size", "stride", "padding"))
def cnn_block_forward(x_nchw, weight, gamma, beta, *, kernel_size, stride, padding):
    """Forward pass matching the PyTorch CNNBlock (training-mode BatchNorm).

    x_nchw : (N, Cin, H, W)    float32
    weight : (Cout, Cin, K, K) float32 (PyTorch Conv2d weight layout, bias=False)
    gamma, beta : (Cout,)      float32 (BatchNorm2d affine)
    returns (N, Cout, OH, OW)  float32
    """
    n, cin, h, w_in = x_nchw.shape
    cout = weight.shape[0]
    k, s, p = kernel_size, stride, padding
    oh = (h + 2 * p - k) // s + 1
    ow = (w_in + 2 * p - k) // s + 1
    kcin = k * cin
    cpad = _round_up(cout, LANE)                       # MXU result-path width
    c_y = cpad if cout >= 64 else _round_up(cout, 8)   # narrow HBM intermediate width

    cap = _vmem_capacity_bytes()
    toh = _pick_row_tile(oh, ow, cpad, c_y, budget_bytes=cap // 8)
    nrt = oh // toh
    qh = oh + (k - 1) // s
    sqh = s * qh
    hp = h + 2 * p

    # ------------- layout prep (one K-fold channel concat; no K*K im2col) -------------
    x_nhwc = jnp.transpose(x_nchw, (0, 2, 3, 1)).astype(jnp.bfloat16)
    x_pad = jnp.pad(x_nhwc, ((0, 0), (p, p), (p, p), (0, 0)))          # (N, HP, WP, Cin)
    # kj-shifted, W-stride-subsampled views concatenated along channels:
    x_cat = jnp.concatenate(
        [x_pad[:, :, kj: kj + (ow - 1) * s + 1: s, :] for kj in range(k)], axis=-1)
    rows_needed = qh * s
    if rows_needed > hp:
        x_cat = jnp.pad(x_cat, ((0, 0), (0, rows_needed - hp), (0, 0), (0, 0)))
    elif rows_needed < hp:
        x_cat = x_cat[:, :rows_needed]
    # Regroup rows by residue mod s: padded row (q*s + r) -> plane r, position q, so
    # each kernel-row tap ki is a contiguous run of TOH rows inside one plane.
    x_res = (x_cat.reshape(n, qh, s, ow, kcin)
             .transpose(0, 2, 1, 3, 4)
             .reshape(n, sqh, ow, kcin))

    # (Cout, Cin, K, K) -> (K, K*Cin, Cpad); rows within ki ordered (kj, cin) to match
    # the x_cat channel concat; Cout zero-padded to a lane-dense multiple of 128.
    w_r = jnp.transpose(weight, (2, 3, 1, 0)).reshape(k, kcin, cout)
    w_r = jnp.pad(w_r, ((0, 0), (0, 0), (0, cpad - cout))).astype(jnp.bfloat16)

    # vmem limit derived from the actual (double-buffered) block footprint.
    x_blk = sqh * ow * kcin * 2
    w_blk = k * kcin * cpad * 2
    y_blk = toh * ow * c_y * 2
    acc_tmp = 3 * toh * ow * cpad * 4
    need1 = 2 * (x_blk + w_blk + y_blk + 2 * cpad * 4) + acc_tmp
    need2 = 2 * (toh * ow * c_y * (2 + 4) + 2 * c_y * 4)
    vmem_limit = int(min(max(2 * max(need1, need2), 16 << 20), int(cap * 0.7)))

    cost = pl.CostEstimate(
        flops=2 * n * oh * ow * k * kcin * cpad,
        transcendentals=0,
        bytes_accessed=(n * nrt * (x_blk + w_blk)
                        + n * oh * ow * c_y * 2
                        + 2 * n * nrt * cpad * 4))

    # ------------- Phase 1: conv (in-kernel ki contraction) + partial BN stats --------
    conv_kernel = functools.partial(_conv_stats_kernel, k=k, s=s, qh=qh, toh=toh)
    y, psum, pssq = pl.pallas_call(
        conv_kernel,
        grid=(n, nrt),
        in_specs=[
            pl.BlockSpec((None, sqh, ow, kcin), lambda nb, rt: (nb, 0, 0, 0)),
            pl.BlockSpec((k, kcin, cpad), lambda nb, rt: (0, 0, 0)),
        ],
        out_specs=[
            pl.BlockSpec((None, toh, ow, c_y), lambda nb, rt: (nb, rt, 0, 0)),
            pl.BlockSpec((None, None, 1, cpad), lambda nb, rt: (nb, rt, 0, 0)),
            pl.BlockSpec((None, None, 1, cpad), lambda nb, rt: (nb, rt, 0, 0)),
        ],
        out_shape=[
            jax.ShapeDtypeStruct((n, oh, ow, c_y), jnp.bfloat16),
            jax.ShapeDtypeStruct((n, nrt, 1, cpad), jnp.float32),
            jax.ShapeDtypeStruct((n, nrt, 1, cpad), jnp.float32),
        ],
        compiler_params=pltpu.CompilerParams(
            dimension_semantics=("parallel", "parallel"),
            vmem_limit_bytes=vmem_limit),
        cost_estimate=cost,
    )(x_res, w_r)

    # ------- BatchNorm stats (training mode, biased variance, real element count) -----
    count = float(n * oh * ow)
    tot_sum = jnp.sum(psum, axis=(0, 1, 2))[:cout]
    tot_ssq = jnp.sum(pssq, axis=(0, 1, 2))[:cout]
    mean = tot_sum / count
    var = jnp.maximum(tot_ssq / count - mean * mean, 0.0)
    a = gamma.astype(jnp.float32) * lax.rsqrt(var + BN_EPS)   # folded BN scale
    b = beta.astype(jnp.float32) - mean * a                   # folded BN shift
    a_p = jnp.pad(a, (0, c_y - cout)).reshape(1, c_y)
    b_p = jnp.pad(b, (0, c_y - cout)).reshape(1, c_y)

    # ------------- Phase 2: normalize + LeakyReLU (parallel, multi-row blocks) --------
    out_nhwc = pl.pallas_call(
        _bn_act_kernel,
        grid=(n, nrt),
        in_specs=[
            pl.BlockSpec((None, toh, ow, c_y), lambda nb, rt: (nb, rt, 0, 0)),
            pl.BlockSpec((1, c_y), lambda nb, rt: (0, 0)),
            pl.BlockSpec((1, c_y), lambda nb, rt: (0, 0)),
        ],
        out_specs=pl.BlockSpec((None, toh, ow, c_y), lambda nb, rt: (nb, rt, 0, 0)),
        out_shape=jax.ShapeDtypeStruct((n, oh, ow, c_y), jnp.float32),
        compiler_params=pltpu.CompilerParams(
            dimension_semantics=("parallel", "parallel"),
            vmem_limit_bytes=vmem_limit),
    )(y, a_p, b_p)

    # Slice padded channels; return NCHW to match the PyTorch module (layout-only).
    return jnp.transpose(out_nhwc[..., :cout], (0, 3, 1, 2))


def _reference(x_nchw, weight, gamma, beta, *, stride, padding):
    """Pure-JAX reference: bf16 conv operands (f32 accumulation) and a bf16 conv
    intermediate to mirror the kernel's data path, then f32 training-mode batchnorm
    and LeakyReLU(0.1)."""
    y = lax.conv_general_dilated(
        x_nchw.astype(jnp.bfloat16), weight.astype(jnp.bfloat16),
        window_strides=(stride, stride),
        padding=((padding, padding), (padding, padding)),
        dimension_numbers=("NCHW", "OIHW", "NCHW"),
        preferred_element_type=jnp.float32)
    y = y.astype(jnp.bfloat16).astype(jnp.float32)   # mirror the bf16 y intermediate
    mean = jnp.mean(y, axis=(0, 2, 3), keepdims=True)
    var = jnp.mean((y - mean) ** 2, axis=(0, 2, 3), keepdims=True)
    y_hat = (y - mean) * lax.rsqrt(var + BN_EPS)
    y_hat = y_hat * gamma.reshape(1, -1, 1, 1) + beta.reshape(1, -1, 1, 1)
    return jnp.where(y_hat > 0, y_hat, LEAKY_SLOPE * y_hat)


if __name__ == "__main__":
    def run_case(n, cin, hw, cout, k, stride, padding, key):
        kx, kw, kg, kb = jax.random.split(key, 4)
        x = jax.random.normal(kx, (n, cin, hw, hw), dtype=jnp.float32)
        weight = jax.random.normal(kw, (cout, cin, k, k), dtype=jnp.float32) * 0.1
        gamma = jax.random.normal(kg, (cout,), dtype=jnp.float32) * 0.1 + 1.0
        beta = jax.random.normal(kb, (cout,), dtype=jnp.float32) * 0.1

        out = cnn_block_forward(x, weight, gamma, beta,
                                kernel_size=k, stride=stride, padding=padding)
        out = jax.block_until_ready(out)

        ref = _reference(x, weight, gamma, beta, stride=stride, padding=padding)
        oh = (hw + 2 * padding - k) // stride + 1
        assert out.shape == (n, cout, oh, oh), out.shape
        err = float(jnp.max(jnp.abs(out - ref)))
        assert err < 3e-3, f"max abs err {err}"

    key = jax.random.PRNGKey(0)
    k1, k2 = jax.random.split(key)
    # CNNBlock(in=4, out=8, kernel=3, stride=1, padding=1) on 2x4x16x16
    run_case(2, 4, 16, 8, 3, 1, 1, k1)
    # CNNBlock(in=4, out=8, kernel=3, stride=2, padding=1) on 2x4x16x16
    run_case(2, 4, 16, 8, 3, 2, 1, k2)

    print("KERNEL_OK")
</pallas_src>

<mosaic_0001>
module attributes {stable_mosaic.version = 11 : i64} {
  func.func @_conv_stats_kernel(%arg0: i32, %arg1: i32, %arg2: memref<1x18x16x12xbf16, #tpu.memory_space<vmem>>, %arg3: memref<3x12x128xbf16, #tpu.memory_space<vmem>>, %arg4: memref<1x16x16x8xbf16, #tpu.memory_space<vmem>>, %arg5: memref<1x1x1x128xf32, #tpu.memory_space<vmem>>, %arg6: memref<1x1x1x128xf32, #tpu.memory_space<vmem>>) attributes {dimension_semantics = [#tpu.dimension_semantics<parallel>, #tpu.dimension_semantics<parallel>], iteration_bounds = array<i64: 2, 1>, scalar_prefetch = 0 : i64, scratch_operands = 0 : i64, tpu.core_type = #tpu.core_type<tc>, window_params = [{transform_indices = @transform_0, window_bounds = array<i64: 1, 18, 16, 12>}, {pipeline_mode = #tpu.pipeline_mode<synchronous>, transform_indices = @transform_1, window_bounds = array<i64: 3, 12, 128>}, {transform_indices = @transform_2, window_bounds = array<i64: 1, 16, 16, 8>}, {transform_indices = @transform_3, window_bounds = array<i64: 1, 1, 1, 128>}, {transform_indices = @transform_4, window_bounds = array<i64: 1, 1, 1, 128>}]} {
    %c16_i32 = arith.constant 16 : i32
    %0 = arith.muli %arg1, %c16_i32 : i32
    %cst = arith.constant 0.000000e+00 : f32
    %1 = vector.broadcast %cst : f32 to vector<256x128xf32>
    %c0_i32 = arith.constant 0 : i32
    %2 = arith.addi %c0_i32, %0 : i32
    %c0 = arith.constant 0 : index
    %3 = arith.index_cast %2 : i32 to index
    %c0_0 = arith.constant 0 : index
    %c0_1 = arith.constant 0 : index
    %4 = vector.load %arg2[%c0, %3, %c0_0, %c0_1] : memref<1x18x16x12xbf16, #tpu.memory_space<vmem>>, vector<1x16x16x12xbf16>
    %5 = vector.shape_cast %4 : vector<1x16x16x12xbf16> to vector<16x16x12xbf16>
    %6 = vector.shape_cast %5 : vector<16x16x12xbf16> to vector<256x12xbf16>
    %c0_2 = arith.constant 0 : index
    %c0_3 = arith.constant 0 : index
    %c0_4 = arith.constant 0 : index
    %7 = vector.load %arg3[%c0_2, %c0_3, %c0_4] : memref<3x12x128xbf16, #tpu.memory_space<vmem>>, vector<1x12x128xbf16>
    %8 = vector.shape_cast %7 : vector<1x12x128xbf16> to vector<12x128xbf16>
    %cst_5 = arith.constant dense<0.000000e+00> : vector<256x128xf32>
    %9 = tpu.matmul %6, %8, %cst_5 {dimension_numbers = #tpu.dot_dimension_numbers<[1], [0], [0], [1], [0, 0, 1, 1], [], []>} : vector<256x12xbf16>, vector<12x128xbf16>, vector<256x128xf32> -> vector<256x128xf32>
    %10 = arith.addf %1, %9 : vector<256x128xf32>
    %c1_i32 = arith.constant 1 : i32
    %11 = arith.addi %c1_i32, %0 : i32
    %c0_6 = arith.constant 0 : index
    %12 = arith.index_cast %11 : i32 to index
    %c0_7 = arith.constant 0 : index
    %c0_8 = arith.constant 0 : index
    %13 = vector.load %arg2[%c0_6, %12, %c0_7, %c0_8] : memref<1x18x16x12xbf16, #tpu.memory_space<vmem>>, vector<1x16x16x12xbf16>
    %14 = vector.shape_cast %13 : vector<1x16x16x12xbf16> to vector<16x16x12xbf16>
    %15 = vector.shape_cast %14 : vector<16x16x12xbf16> to vector<256x12xbf16>
    %c1 = arith.constant 1 : index
    %c0_9 = arith.constant 0 : index
    %c0_10 = arith.constant 0 : index
    %16 = vector.load %arg3[%c1, %c0_9, %c0_10] : memref<3x12x128xbf16, #tpu.memory_space<vmem>>, vector<1x12x128xbf16>
    %17 = vector.shape_cast %16 : vector<1x12x128xbf16> to vector<12x128xbf16>
    %cst_11 = arith.constant dense<0.000000e+00> : vector<256x128xf32>
    %18 = tpu.matmul %15, %17, %cst_11 {dimension_numbers = #tpu.dot_dimension_numbers<[1], [0], [0], [1], [0, 0, 1, 1], [], []>} : vector<256x12xbf16>, vector<12x128xbf16>, vector<256x128xf32> -> vector<256x128xf32>
    %19 = arith.addf %10, %18 : vector<256x128xf32>
    %c2_i32 = arith.constant 2 : i32
    %20 = arith.addi %c2_i32, %0 : i32
    %c0_12 = arith.constant 0 : index
    %21 = arith.index_cast %20 : i32 to index
    %c0_13 = arith.constant 0 : index
    %c0_14 = arith.constant 0 : index
    %22 = vector.load %arg2[%c0_12, %21, %c0_13, %c0_14] : memref<1x18x16x12xbf16, #tpu.memory_space<vmem>>, vector<1x16x16x12xbf16>
    %23 = vector.shape_cast %22 : vector<1x16x16x12xbf16> to vector<16x16x12xbf16>
    %24 = vector.shape_cast %23 : vector<16x16x12xbf16> to vector<256x12xbf16>
    %c2 = arith.constant 2 : index
    %c0_15 = arith.constant 0 : index
    %c0_16 = arith.constant 0 : index
    %25 = vector.load %arg3[%c2, %c0_15, %c0_16] : memref<3x12x128xbf16, #tpu.memory_space<vmem>>, vector<1x12x128xbf16>
    %26 = vector.shape_cast %25 : vector<1x12x128xbf16> to vector<12x128xbf16>
    %cst_17 = arith.constant dense<0.000000e+00> : vector<256x128xf32>
    %27 = tpu.matmul %24, %26, %cst_17 {dimension_numbers = #tpu.dot_dimension_numbers<[1], [0], [0], [1], [0, 0, 1, 1], [], []>} : vector<256x12xbf16>, vector<12x128xbf16>, vector<256x128xf32> -> vector<256x128xf32>
    %28 = arith.addf %19, %27 : vector<256x128xf32>
    %cst_18 = arith.constant dense<0.000000e+00> : vector<128xf32>
    %29 = vector.multi_reduction <add>, %28, %cst_18 [0] : vector<256x128xf32> to vector<128xf32>
    %30 = vector.shape_cast %29 : vector<128xf32> to vector<1x128xf32>
    %c0_19 = arith.constant 0 : index
    %c0_20 = arith.constant 0 : index
    %c0_21 = arith.constant 0 : index
    %c0_22 = arith.constant 0 : index
    %31 = vector.load %arg5[%c0_19, %c0_20, %c0_21, %c0_22] : memref<1x1x1x128xf32, #tpu.memory_space<vmem>>, vector<1x1x1x128xf32>
    %32 = vector.shape_cast %31 : vector<1x1x1x128xf32> to vector<1x128xf32>
    %33 = vector.shape_cast %30 : vector<1x128xf32> to vector<1x1x1x128xf32>
    tpu.vector_store %arg5[%c0_19, %c0_20, %c0_21, %c0_22], %33 {strides = array<i32>} : memref<1x1x1x128xf32, #tpu.memory_space<vmem>>, vector<1x1x1x128xf32>,
    %34 = arith.mulf %28, %28 : vector<256x128xf32>
    %cst_23 = arith.constant dense<0.000000e+00> : vector<128xf32>
    %35 = vector.multi_reduction <add>, %34, %cst_23 [0] : vector<256x128xf32> to vector<128xf32>
    %36 = vector.shape_cast %35 : vector<128xf32> to vector<1x128xf32>
    %c0_24 = arith.constant 0 : index
    %c0_25 = arith.constant 0 : index
    %c0_26 = arith.constant 0 : index
    %c0_27 = arith.constant 0 : index
    %37 = vector.load %arg6[%c0_24, %c0_25, %c0_26, %c0_27] : memref<1x1x1x128xf32, #tpu.memory_space<vmem>>, vector<1x1x1x128xf32>
    %38 = vector.shape_cast %37 : vector<1x1x1x128xf32> to vector<1x128xf32>
    %39 = vector.shape_cast %36 : vector<1x128xf32> to vector<1x1x1x128xf32>
    tpu.vector_store %arg6[%c0_24, %c0_25, %c0_26, %c0_27], %39 {strides = array<i32>} : memref<1x1x1x128xf32, #tpu.memory_space<vmem>>, vector<1x1x1x128xf32>,
    %40 = vector.extract_strided_slice %28 {offsets = [0, 0], sizes = [256, 8], strides = [1, 1]} : vector<256x128xf32> to vector<256x8xf32>
    %41 = vector.shape_cast %40 : vector<256x8xf32> to vector<16x16x8xf32>
    %42 = arith.truncf %41 : vector<16x16x8xf32> to vector<16x16x8xbf16>
    %c0_28 = arith.constant 0 : index
    %c0_29 = arith.constant 0 : index
    %c0_30 = arith.constant 0 : index
    %c0_31 = arith.constant 0 : index
    %43 = vector.load %arg4[%c0_28, %c0_29, %c0_30, %c0_31] : memref<1x16x16x8xbf16, #tpu.memory_space<vmem>>, vector<1x16x16x8xbf16>
    %44 = vector.shape_cast %43 : vector<1x16x16x8xbf16> to vector<16x16x8xbf16>
    %45 = vector.shape_cast %42 : vector<16x16x8xbf16> to vector<1x16x16x8xbf16>
    tpu.vector_store %arg4[%c0_28, %c0_29, %c0_30, %c0_31], %45 {strides = array<i32>} : memref<1x16x16x8xbf16, #tpu.memory_space<vmem>>, vector<1x16x16x8xbf16>,
    return
  }
  func.func @transform_0(%arg0: i32, %arg1: i32) -> (i32, i32, i32, i32) {
    %c0_i32 = arith.constant 0 : i32
    %c0_i32_0 = arith.constant 0 : i32
    %c0_i32_1 = arith.constant 0 : i32
    %c0_i32_2 = arith.constant 0 : i32
    return %arg0, %c0_i32, %c0_i32_0, %c0_i32_1 : i32, i32, i32, i32
  }
  func.func @transform_1(%arg0: i32, %arg1: i32) -> (i32, i32, i32) {
    %c0_i32 = arith.constant 0 : i32
    %c0_i32_0 = arith.constant 0 : i32
    %c0_i32_1 = arith.constant 0 : i32
    %c0_i32_2 = arith.constant 0 : i32
    return %c0_i32, %c0_i32_0, %c0_i32_1 : i32, i32, i32
  }
  func.func @transform_2(%arg0: i32, %arg1: i32) -> (i32, i32, i32, i32) {
    %c0_i32 = arith.constant 0 : i32
    %c0_i32_0 = arith.constant 0 : i32
    %c0_i32_1 = arith.constant 0 : i32
    return %arg0, %arg1, %c0_i32, %c0_i32_0 : i32, i32, i32, i32
  }
  func.func @transform_3(%arg0: i32, %arg1: i32) -> (i32, i32, i32, i32) {
    %c0_i32 = arith.constant 0 : i32
    %c0_i32_0 = arith.constant 0 : i32
    %c0_i32_1 = arith.constant 0 : i32
    return %arg0, %arg1, %c0_i32, %c0_i32_0 : i32, i32, i32, i32
  }
  func.func @transform_4(%arg0: i32, %arg1: i32) -> (i32, i32, i32, i32) {
    %c0_i32 = arith.constant 0 : i32
    %c0_i32_0 = arith.constant 0 : i32
    %c0_i32_1 = arith.constant 0 : i32
    return %arg0, %arg1, %c0_i32, %c0_i32_0 : i32, i32, i32, i32
  }
}

module attributes {stable_mosaic.version = 11 : i64} {
  func.func @_bn_act_kernel(%arg0: i32, %arg1: i32, %arg2: memref<1x16x16x8xbf16, #tpu.memory_space<vmem>>, %arg3: memref<1x8xf32, #tpu.memory_space<vmem>>, %arg4: memref<1x8xf32, #tpu.memory_space<vmem>>, %arg5: memref<1x16x16x8xf32, #tpu.memory_space<vmem>>) attributes {dimension_semantics = [#tpu.dimension_semantics<parallel>, #tpu.dimension_semantics<parallel>], iteration_bounds = array<i64: 2, 1>, scalar_prefetch = 0 : i64, scratch_operands = 0 : i64, tpu.core_type = #tpu.core_type<tc>, window_params = [{transform_indices = @transform_0, window_bounds = array<i64: 1, 16, 16, 8>}, {pipeline_mode = #tpu.pipeline_mode<synchronous>, transform_indices = @transform_1, window_bounds = array<i64: 1, 8>}, {pipeline_mode = #tpu.pipeline_mode<synchronous>, transform_indices = @transform_2, window_bounds = array<i64: 1, 8>}, {transform_indices = @transform_3, window_bounds = array<i64: 1, 16, 16, 8>}]} {
    %c0 = arith.constant 0 : index
    %c0_0 = arith.constant 0 : index
    %c0_1 = arith.constant 0 : index
    %c0_2 = arith.constant 0 : index
    %0 = vector.load %arg2[%c0, %c0_0, %c0_1, %c0_2] : memref<1x16x16x8xbf16, #tpu.memory_space<vmem>>, vector<1x16x16x8xbf16>
    %1 = vector.shape_cast %0 : vector<1x16x16x8xbf16> to vector<16x16x8xbf16>
    %2 = arith.extf %1 : vector<16x16x8xbf16> to vector<16x16x8xf32>
    %c0_3 = arith.constant 0 : index
    %c0_4 = arith.constant 0 : index
    %3 = vector.load %arg3[%c0_3, %c0_4] : memref<1x8xf32, #tpu.memory_space<vmem>>, vector<1x8xf32>
    %4 = vector.shape_cast %3 : vector<1x8xf32> to vector<1x1x8xf32>
    %5 = vector.broadcast %4 : vector<1x1x8xf32> to vector<16x16x8xf32>
    %6 = arith.mulf %2, %5 : vector<16x16x8xf32>
    %c0_5 = arith.constant 0 : index
    %c0_6 = arith.constant 0 : index
    %7 = vector.load %arg4[%c0_5, %c0_6] : memref<1x8xf32, #tpu.memory_space<vmem>>, vector<1x8xf32>
    %8 = vector.shape_cast %7 : vector<1x8xf32> to vector<1x1x8xf32>
    %9 = vector.broadcast %8 : vector<1x1x8xf32> to vector<16x16x8xf32>
    %10 = arith.addf %6, %9 : vector<16x16x8xf32>
    %cst = arith.constant 1.000000e-01 : f32
    %11 = vector.broadcast %cst : f32 to vector<16x16x8xf32>
    %12 = arith.mulf %11, %10 : vector<16x16x8xf32>
    %13 = arith.maximumf %10, %12 : vector<16x16x8xf32>
    %c0_7 = arith.constant 0 : index
    %c0_8 = arith.constant 0 : index
    %c0_9 = arith.constant 0 : index
    %c0_10 = arith.constant 0 : index
    %14 = vector.load %arg5[%c0_7, %c0_8, %c0_9, %c0_10] : memref<1x16x16x8xf32, #tpu.memory_space<vmem>>, vector<1x16x16x8xf32>
    %15 = vector.shape_cast %14 : vector<1x16x16x8xf32> to vector<16x16x8xf32>
    %16 = vector.shape_cast %13 : vector<16x16x8xf32> to vector<1x16x16x8xf32>
    tpu.vector_store %arg5[%c0_7, %c0_8, %c0_9, %c0_10], %16 {strides = array<i32>} : memref<1x16x16x8xf32, #tpu.memory_space<vmem>>, vector<1x16x16x8xf32>,
    return
  }
  func.func @transform_0(%arg0: i32, %arg1: i32) -> (i32, i32, i32, i32) {
    %c0_i32 = arith.constant 0 : i32
    %c0_i32_0 = arith.constant 0 : i32
    %c0_i32_1 = arith.constant 0 : i32
    return %arg0, %arg1, %c0_i32, %c0_i32_0 : i32, i32, i32, i32
  }
  func.func @transform_1(%arg0: i32, %arg1: i32) -> (i32, i32) {
    %c0_i32 = arith.constant 0 : i32
    %c0_i32_0 = arith.constant 0 : i32
    %c0_i32_1 = arith.constant 0 : i32
    return %c0_i32, %c0_i32_0 : i32, i32
  }
  func.func @transform_2(%arg0: i32, %arg1: i32) -> (i32, i32) {
    %c0_i32 = arith.constant 0 : i32
    %c0_i32_0 = arith.constant 0 : i32
    %c0_i32_1 = arith.constant 0 : i32
    return %c0_i32, %c0_i32_0 : i32, i32
  }
  func.func @transform_3(%arg0: i32, %arg1: i32) -> (i32, i32, i32, i32) {
    %c0_i32 = arith.constant 0 : i32
    %c0_i32_0 = arith.constant 0 : i32
    %c0_i32_1 = arith.constant 0 : i32
    return %arg0, %arg1, %c0_i32, %c0_i32_0 : i32, i32, i32, i32
  }
}

</mosaic_0001>

<llo_original>
// kernel: cnn_block_forward.3
$region0: #{cnn_block_forward.3}
  #allocation0 [shape = 'u32[]', space=smem, size = 0x4, offset = 0x4, fixed_abs, tag = 'smem constant byte address 0x4 - core index']
  #allocation1 [shape = 'u32[144,128]{1,0:T(1,128)}', space=vmem, size = 0x12000, scoped, tag = 'internal scratch']
  %s0 = inlined_call_operand.vmem [shape: bf16[2,16,16,8], index: 0, kind: input, shape index: {}]
  %s1 = inlined_call_operand.vmem [shape: f32[1,8], index: 1, kind: input, shape index: {}]
  %s2 = inlined_call_operand.vmem [shape: f32[1,8], index: 2, kind: input, shape index: {}]
  %s3 = inlined_call_operand.vmem [shape: f32[2,16,16,8], index: 3, kind: output, shape index: {}]
  %s4 = sld [smem:[#allocation0]]
  $region45: #{cnn_block_forward.3} parent=0
    _
  %s6 = ssub.s32 1, %s4
  %s7 = scalar_select 0, %s6, %s4
  loop: start=0, step=1, limit=4
  $region2: #{cnn_block_forward.3} parent=0 // loop_pre_header
    _
  $region3: #{cnn_block_forward.3} parent=0 // loop_header
    %s9 = sphi 0, %s13
    %p10 = scmp.ge.s32.totalorder %s9, 4
    %s16 = sphi 0, %s28
    %s17 = sphi 0, %s24
    %s18 = sphi 0, %s16
    %s19 = sphi 0, %s17
    %s20 = sphi 0, %s18
    %s21 = sphi 0, %s19
    %s33 = sphi 0, %s35
    %s36 = sphi 0, %s33
    %s37 = sphi 0, %s36
    %s53 = sphi 0, %s37
    %s57 = sphi 0, %s57
    %s59 = sphi 0, %s57
    %s60 = sphi 0, %s59
    %s74 = sphi 0, %s60
    %s78 = sphi 0, %s78
    %s80 = sphi 0, %s78
    %s81 = sphi 0, %s80
    %s95 = sphi 0, %s81
    %s103 = sphi 0, %s105
    %s106 = sphi 0, %s103
    %s107 = sphi 0, %s106
    %s123 = sphi 0, %s107
  $region4: #{cnn_block_forward.3} parent=0 // loop_header_branch
    %12 = sbr.rel (%p10) target = $region8
  $region5: #{cnn_block_forward.3} parent=0 // loop_body
    %s14 = ssub.s32 %s9, 1
    %s15 = ssub.s32 %s9, 2
    %s22 = sadd.s32 1, %s17
    %p23 = scmp.ge.s32.totalorder %s22, 1
    %s24 = scalar_select %p23, 0, %s22
    %s25 = sadd.s32 1, %s16
    %s26 = scalar_select %p23, %s25, %s16
    %p27 = scmp.ge.s32.totalorder %s26, 2
    %s28 = scalar_select %p27, 0, %s26
    %s29 = ssub.s32 %s16, %s28
    %s30 = ssub.s32 %s17, %s24
    %s31 = sor.u32 %s29, %s30
    %p32 = scmp.eq.s32.totalorder %s31, 0
    %s34 = sadd.s32 %s33, 1
    %s35 = scalar_select %p32, %s33, %s34
    %p38 = pneg %p32
    %p39 = scmp.eq.s32.totalorder %s9, 1
    %p40 = por %p38, %p39
    %p41 = scmp.ne.s32.totalorder %s33, %s36
    %p42 = scmp.eq.s32.totalorder %s9, 0
    %p43 = por %p41, %p42
    %p44 = scmp.ne.s32.totalorder %s33, %s36
    %p45 = scmp.eq.s32.totalorder %s14, 1
    %p46 = por %p44, %p45
    %p47 = scmp.ne.s32.totalorder %s36, %s37
    %p48 = scmp.eq.s32.totalorder %s14, 0
    %p49 = por %p47, %p48
    %p50 = scmp.ne.s32.totalorder %s36, %s37
    %p51 = scmp.eq.s32.totalorder %s15, 1
    %p52 = por %p50, %p51
    %p54 = scmp.ne.s32.totalorder %s37, %s53
    %p55 = scmp.eq.s32.totalorder %s15, 0
    %p56 = por %p54, %p55
    %s58 = sadd.s32 %s57, 1
    %p61 = scmp.eq.s32.totalorder %s9, 1
    %p62 = scmp.ne.s32.totalorder %s57, %s59
    %p63 = scmp.eq.s32.totalorder %s9, 0
    %p64 = por %p62, %p63
    %p65 = scmp.ne.s32.totalorder %s57, %s59
    %p66 = scmp.eq.s32.totalorder %s14, 1
    %p67 = por %p65, %p66
    %p68 = scmp.ne.s32.totalorder %s59, %s60
    %p69 = scmp.eq.s32.totalorder %s14, 0
    %p70 = por %p68, %p69
    %p71 = scmp.ne.s32.totalorder %s59, %s60
    %p72 = scmp.eq.s32.totalorder %s15, 1
    %p73 = por %p71, %p72
    %p75 = scmp.ne.s32.totalorder %s60, %s74
    %p76 = scmp.eq.s32.totalorder %s15, 0
    %p77 = por %p75, %p76
    %s79 = sadd.s32 %s78, 1
    %p82 = scmp.eq.s32.totalorder %s9, 1
    %p83 = scmp.ne.s32.totalorder %s78, %s80
    %p84 = scmp.eq.s32.totalorder %s9, 0
    %p85 = por %p83, %p84
    %p86 = scmp.ne.s32.totalorder %s78, %s80
    %p87 = scmp.eq.s32.totalorder %s14, 1
    %p88 = por %p86, %p87
    %p89 = scmp.ne.s32.totalorder %s80, %s81
    %p90 = scmp.eq.s32.totalorder %s14, 0
    %p91 = por %p89, %p90
    %p92 = scmp.ne.s32.totalorder %s80, %s81
    %p93 = scmp.eq.s32.totalorder %s15, 1
    %p94 = por %p92, %p93
    %p96 = scmp.ne.s32.totalorder %s81, %s95
    %p97 = scmp.eq.s32.totalorder %s15, 0
    %p98 = por %p96, %p97
    %s99 = ssub.s32 %s16, %s28
    %s100 = ssub.s32 %s17, %s24
    %s101 = sor.u32 %s99, %s100
    %p102 = scmp.eq.s32.totalorder %s101, 0
    %s104 = sadd.s32 %s103, 1
    %s105 = scalar_select %p102, %s103, %s104
    %p108 = pneg %p102
    %p109 = scmp.eq.s32.totalorder %s9, 1
    %p110 = por %p108, %p109
    %p111 = scmp.ne.s32.totalorder %s103, %s106
    %p112 = scmp.eq.s32.totalorder %s9, 0
    %p113 = por %p111, %p112
    %p114 = scmp.ne.s32.totalorder %s103, %s106
    %p115 = scmp.eq.s32.totalorder %s14, 1
    %p116 = por %p114, %p115
    %p117 = scmp.ne.s32.totalorder %s106, %s107
    %p118 = scmp.eq.s32.totalorder %s14, 0
    %p119 = por %p117, %p118
    %p120 = scmp.ne.s32.totalorder %s106, %s107
    %p121 = scmp.eq.s32.totalorder %s15, 1
    %p122 = por %p120, %p121
    %p124 = scmp.ne.s32.totalorder %s107, %s123
    %p125 = scmp.eq.s32.totalorder %s15, 0
    %p126 = por %p124, %p125
    %p127 = scmp.le.s32.totalorder 1, %s9
    %p128 = scmp.lt.s32.totalorder %s9, 3
    %p129 = pnand %p127, %p128
    %p130 = pneg %p129
    // Predicated region
    $region9: #{cnn_block_forward.3} parent=5 // pred_check
      _
    $region10: #{cnn_block_forward.3} parent=5 // pred_check_branch
      %132 = sbr.rel (%p129) target = $region12
    $region11: #{cnn_block_forward.3} parent=5 // pred_region
      %s133 = ssub.s32 %s9, 1
      // Predicated region
      $region13: #{cnn_block_forward.3} parent=11 // pred_check
        %p134 = pneg %p70
      $region14: #{cnn_block_forward.3} parent=11 // pred_check_branch
        %136 = sbr.rel (%p134) target = $region16
      $region15: #{cnn_block_forward.3} parent=11 // pred_region
        _
      $region16: #{cnn_block_forward.3} parent=11 // pred_fallthru
        _
      // Predicated region
      $region17: #{cnn_block_forward.3} parent=11 // pred_check
        %p137 = pneg %p91
      $region18: #{cnn_block_forward.3} parent=11 // pred_check_branch
        %139 = sbr.rel (%p137) target = $region20
      $region19: #{cnn_block_forward.3} parent=11 // pred_region
        _
      $region20: #{cnn_block_forward.3} parent=11 // pred_fallthru
        _
    $region12: #{cnn_block_forward.3} parent=5 // pred_fallthru
      _
    %p140 = scmp.lt.s32.totalorder %s9, 2
    // Predicated region
    $region21: #{cnn_block_forward.3} parent=5 // pred_check
      %p141 = pneg %p140
    $region22: #{cnn_block_forward.3} parent=5 // pred_check_branch
      %143 = sbr.rel (%p141) target = $region24
    $region23: #{cnn_block_forward.3} parent=5 // pred_region
      // Predicated region
      $region25: #{cnn_block_forward.3} parent=23 // pred_check
        %p144 = pneg %p43
      $region26: #{cnn_block_forward.3} parent=23 // pred_check_branch
        %146 = sbr.rel (%p144) target = $region28
      $region27: #{cnn_block_forward.3} parent=23 // pred_region
        %s147 = smul.u32 16, %s17
        %p148 = scmp.lt.s32.totalorder %s16, 1
        %s149 = scalar_select %p148, %s16, 1
        %p150 = scmp.lt.s32.totalorder %s147, 15
        %s151 = scalar_select %p150, %s147, 15
        %s152 = smul.addr %s151, 2
        %s153 = smul.addr %s149, 32
        %s154 = sadd.s32 %s152, %s153
        %s155 = smul.addr %s154, 4
        %s156 = scalar_lea.vmem %s0, %s155
        %s157 = smul.u32 16, %s17
      $region28: #{cnn_block_forward.3} parent=23 // pred_fallthru
        _
    $region24: #{cnn_block_forward.3} parent=5 // pred_fallthru
      _
    %p158 = scmp.le.s32.totalorder 1, %s9
    %p159 = scmp.lt.s32.totalorder %s9, 3
    %p160 = pnand %p158, %p159
    %p161 = pneg %p160
    // Predicated region
    $region29: #{cnn_block_forward.3} parent=5 // pred_check
      _
    $region30: #{cnn_block_forward.3} parent=5 // pred_check_branch
      %163 = sbr.rel (%p160) target = $region32
    $region31: #{cnn_block_forward.3} parent=5 // pred_region
      %s164 = ssub.s32 %s9, 1
      %s165 = smul.u32 16, %s19
      %p166 = scmp.lt.s32.totalorder %s18, 1
      %s167 = scalar_select %p166, %s18, 1
      %p168 = scmp.lt.s32.totalorder %s165, 15
      %s169 = scalar_select %p168, %s165, 15
      %s170 = smul.addr %s169, 2
      %s171 = smul.addr %s167, 32
      %s172 = sadd.s32 %s170, %s171
      %s173 = smul.addr %s172, 4
      %s174 = scalar_lea.vmem %s0, %s173
      %p175 = pneg %p49
      %p176 = pneg %p46
      %p177 = pneg %p70
      %p178 = pneg %p67
      %p179 = pneg %p91
      %p180 = pneg %p88
      %p181 = pneg %p119
      %p182 = pneg %p116
      %s183 = smul.u32 16, %s19
      %p184 = scmp.lt.s32.totalorder %s18, 1
      %s185 = scalar_select %p184, %s18, 1
      %p186 = scmp.lt.s32.totalorder %s183, 15
      %s187 = scalar_select %p186, %s183, 15
      %s188 = smul.addr %s187, 2
      %s189 = smul.addr %s185, 32
      %s190 = sadd.s32 %s188, %s189
      %s191 = smul.addr %s190, 8
      %s192 = scalar_lea.vmem %s3, %s191
      %s193 = smul.u32 16, %s19
      %p194 = scmp.lt.s32.totalorder %s18, 1
      %s195 = scalar_select %p194, %s18, 1
      %p196 = scmp.lt.s32.totalorder %s193, 15
      %s197 = scalar_select %p196, %s193, 15
      %s198 = smul.addr %s197, 2
      %s199 = smul.addr %s195, 32
      %s200 = sadd.s32 %s198, %s199
      %s201 = smul.addr %s200, 4
      %s202 = scalar_lea.vmem %s0, %s201
      %s203 = smul.u32 16, %s19
      %s204 = smul.u32 16, %s19
      %p205 = scmp.lt.s32.totalorder %s18, 1
      %s206 = scalar_select %p205, %s18, 1
      %p207 = scmp.lt.s32.totalorder %s204, 15
      %s208 = scalar_select %p207, %s204, 15
      %s209 = smul.addr %s208, 2
      %s210 = smul.addr %s206, 32
      %s211 = sadd.s32 %s209, %s210
      %s212 = smul.addr %s211, 8
      %s213 = scalar_lea.vmem %s3, %s212
      %s214 = smul.u32 16, %s19
      %v215 = vld [vmem:[%s202] sm:$0xf]
      %v216 = vld [vmem:[%s202 + $0x4] sm:$0xf]
      %v217 = vld [vmem:[%s202 + $0x8] sm:$0xf]
      %v218 = vld [vmem:[%s202 + $0xc] sm:$0xf]
      %v219 = vld [vmem:[%s202 + $0x10] sm:$0xf]
      %v220 = vld [vmem:[%s202 + $0x14] sm:$0xf]
      %v221 = vld [vmem:[%s202 + $0x18] sm:$0xf]
      %v222 = vld [vmem:[%s202 + $0x1c] sm:$0xf]
      %v223 = vld [vmem:[%s202 + $0x20] sm:$0xf]
      %v224 = vld [vmem:[%s202 + $0x24] sm:$0xf]
      %v225 = vld [vmem:[%s202 + $0x28] sm:$0xf]
      %v226 = vld [vmem:[%s202 + $0x2c] sm:$0xf]
      %v227 = vld [vmem:[%s202 + $0x30] sm:$0xf]
      %v228 = vld [vmem:[%s202 + $0x34] sm:$0xf]
      %v229 = vld [vmem:[%s202 + $0x38] sm:$0xf]
      %v230 = vld [vmem:[%s202 + $0x3c] sm:$0xf]
      %v231 = vld [vmem:[%s202 + $0x40] sm:$0xf]
      %v232 = vld [vmem:[%s202 + $0x44] sm:$0xf]
      %v233 = vld [vmem:[%s202 + $0x48] sm:$0xf]
      %v234 = vld [vmem:[%s202 + $0x4c] sm:$0xf]
      %v235 = vld [vmem:[%s202 + $0x50] sm:$0xf]
      %v236 = vld [vmem:[%s202 + $0x54] sm:$0xf]
      %v237 = vld [vmem:[%s202 + $0x58] sm:$0xf]
      %v238 = vld [vmem:[%s202 + $0x5c] sm:$0xf]
      %v239 = vld [vmem:[%s202 + $0x60] sm:$0xf]
      %v240 = vld [vmem:[%s202 + $0x64] sm:$0xf]
      %v241 = vld [vmem:[%s202 + $0x68] sm:$0xf]
      %v242 = vld [vmem:[%s202 + $0x6c] sm:$0xf]
      %v243 = vld [vmem:[%s202 + $0x70] sm:$0xf]
      %v244 = vld [vmem:[%s202 + $0x74] sm:$0xf]
      %v245 = vld [vmem:[%s202 + $0x78] sm:$0xf]
      %v246 = vld [vmem:[%s202 + $0x7c] sm:$0xf]
      %v247 = vunpack.c.l.bf16 %v215
      %v248 = vunpack.c.l.bf16 %v216
      %v249 = vunpack.c.l.bf16 %v217
      %v250 = vunpack.c.l.bf16 %v218
      %v251 = vunpack.c.l.bf16 %v219
      %v252 = vunpack.c.l.bf16 %v220
      %v253 = vunpack.c.l.bf16 %v221
      %v254 = vunpack.c.l.bf16 %v222
      %v255 = vunpack.c.l.bf16 %v223
      %v256 = vunpack.c.l.bf16 %v224
      %v257 = vunpack.c.l.bf16 %v225
      %v258 = vunpack.c.l.bf16 %v226
      %v259 = vunpack.c.l.bf16 %v227
      %v260 = vunpack.c.l.bf16 %v228
      %v261 = vunpack.c.l.bf16 %v229
      %v262 = vunpack.c.l.bf16 %v230
      %v263 = vunpack.c.l.bf16 %v231
      %v264 = vunpack.c.l.bf16 %v232
      %v265 = vunpack.c.l.bf16 %v233
      %v266 = vunpack.c.l.bf16 %v234
      %v267 = vunpack.c.l.bf16 %v235
      %v268 = vunpack.c.l.bf16 %v236
      %v269 = vunpack.c.l.bf16 %v237
      %v270 = vunpack.c.l.bf16 %v238
      %v271 = vunpack.c.l.bf16 %v239
      %v272 = vunpack.c.l.bf16 %v240
      %v273 = vunpack.c.l.bf16 %v241
      %v274 = vunpack.c.l.bf16 %v242
      %v275 = vunpack.c.l.bf16 %v243
      %v276 = vunpack.c.l.bf16 %v244
      %v277 = vunpack.c.l.bf16 %v245
      %v278 = vunpack.c.l.bf16 %v246
      %v279 = vld [vmem:[%s1] sm:$0x1]
      %v281 = vlaneseq
      %v282 = vshrl.u32 %v281, 7
      %v283 = vsub.s32 0, %v282
      %v284 = vrot.slane %v279, %v283
      %v286 = vmul.f32 %v247, %v284
      %v287 = vmul.f32 %v248, %v284
      %v288 = vmul.f32 %v249, %v284
      %v289 = vmul.f32 %v250, %v284
      %v290 = vmul.f32 %v251, %v284
      %v291 = vmul.f32 %v252, %v284
      %v292 = vmul.f32 %v253, %v284
      %v293 = vmul.f32 %v254, %v284
      %v294 = vmul.f32 %v255, %v284
      %v295 = vmul.f32 %v256, %v284
      %v296 = vmul.f32 %v257, %v284
      %v297 = vmul.f32 %v258, %v284
      %v298 = vmul.f32 %v259, %v284
      %v299 = vmul.f32 %v260, %v284
      %v300 = vmul.f32 %v261, %v284
      %v301 = vmul.f32 %v262, %v284
      %v302 = vmul.f32 %v263, %v284
      %v303 = vmul.f32 %v264, %v284
      %v304 = vmul.f32 %v265, %v284
      %v305 = vmul.f32 %v266, %v284
      %v306 = vmul.f32 %v267, %v284
      %v307 = vmul.f32 %v268, %v284
      %v308 = vmul.f32 %v269, %v284
      %v309 = vmul.f32 %v270, %v284
      %v310 = vmul.f32 %v271, %v284
      %v311 = vmul.f32 %v272, %v284
      %v312 = vmul.f32 %v273, %v284
      %v313 = vmul.f32 %v274, %v284
      %v314 = vmul.f32 %v275, %v284
      %v315 = vmul.f32 %v276, %v284
      %v316 = vmul.f32 %v277, %v284
      %v317 = vmul.f32 %v278, %v284
      %v318 = vld [vmem:[%s2] sm:$0x1]
      %v320 = vlaneseq
      %v321 = vshrl.u32 %v320, 7
      %v322 = vsub.s32 0, %v321
      %v323 = vrot.slane %v318, %v322
      %v325 = vadd.f32 %v286, %v323
      %v326 = vadd.f32 %v287, %v323
      %v327 = vadd.f32 %v288, %v323
      %v328 = vadd.f32 %v289, %v323
      %v329 = vadd.f32 %v290, %v323
      %v330 = vadd.f32 %v291, %v323
      %v331 = vadd.f32 %v292, %v323
      %v332 = vadd.f32 %v293, %v323
      %v333 = vadd.f32 %v294, %v323
      %v334 = vadd.f32 %v295, %v323
      %v335 = vadd.f32 %v296, %v323
      %v336 = vadd.f32 %v297, %v323
      %v337 = vadd.f32 %v298, %v323
      %v338 = vadd.f32 %v299, %v323
      %v339 = vadd.f32 %v300, %v323
      %v340 = vadd.f32 %v301, %v323
      %v341 = vadd.f32 %v302, %v323
      %v342 = vadd.f32 %v303, %v323
      %v343 = vadd.f32 %v304, %v323
      %v344 = vadd.f32 %v305, %v323
      %v345 = vadd.f32 %v306, %v323
      %v346 = vadd.f32 %v307, %v323
      %v347 = vadd.f32 %v308, %v323
      %v348 = vadd.f32 %v309, %v323
      %v349 = vadd.f32 %v310, %v323
      %v350 = vadd.f32 %v311, %v323
      %v351 = vadd.f32 %v312, %v323
      %v352 = vadd.f32 %v313, %v323
      %v353 = vadd.f32 %v314, %v323
      %v354 = vadd.f32 %v315, %v323
      %v355 = vadd.f32 %v316, %v323
      %v356 = vadd.f32 %v317, %v323
      %v357 = vmul.f32 %v325, 0.1
      %v358 = vmul.f32 %v326, 0.1
      %v359 = vmul.f32 %v327, 0.1
      %v360 = vmul.f32 %v328, 0.1
      %v361 = vmul.f32 %v329, 0.1
      %v362 = vmul.f32 %v330, 0.1
      %v363 = vmul.f32 %v331, 0.1
      %v364 = vmul.f32 %v332, 0.1
      %v365 = vmul.f32 %v333, 0.1
      %v366 = vmul.f32 %v334, 0.1
      %v367 = vmul.f32 %v335, 0.1
      %v368 = vmul.f32 %v336, 0.1
      %v369 = vmul.f32 %v337, 0.1
      %v370 = vmul.f32 %v338, 0.1
      %v371 = vmul.f32 %v339, 0.1
      %v372 = vmul.f32 %v340, 0.1
      %v373 = vmul.f32 %v341, 0.1
      %v374 = vmul.f32 %v342, 0.1
      %v375 = vmul.f32 %v343, 0.1
      %v376 = vmul.f32 %v344, 0.1
      %v377 = vmul.f32 %v345, 0.1
      %v378 = vmul.f32 %v346, 0.1
      %v379 = vmul.f32 %v347, 0.1
      %v380 = vmul.f32 %v348, 0.1
      %v381 = vmul.f32 %v349, 0.1
      %v382 = vmul.f32 %v350, 0.1
      %v383 = vmul.f32 %v351, 0.1
      %v384 = vmul.f32 %v352, 0.1
      %v385 = vmul.f32 %v353, 0.1
      %v386 = vmul.f32 %v354, 0.1
      %v387 = vmul.f32 %v355, 0.1
      %v388 = vmul.f32 %v356, 0.1
      %v389 = vmax.f32 %v325, %v357
      %v390 = vmax.f32 %v326, %v358
      %v391 = vmax.f32 %v327, %v359
      %v392 = vmax.f32 %v328, %v360
      %v393 = vmax.f32 %v329, %v361
      %v394 = vmax.f32 %v330, %v362
      %v395 = vmax.f32 %v331, %v363
      %v396 = vmax.f32 %v332, %v364
      %v397 = vmax.f32 %v333, %v365
      %v398 = vmax.f32 %v334, %v366
      %v399 = vmax.f32 %v335, %v367
      %v400 = vmax.f32 %v336, %v368
      %v401 = vmax.f32 %v337, %v369
      %v402 = vmax.f32 %v338, %v370
      %v403 = vmax.f32 %v339, %v371
      %v404 = vmax.f32 %v340, %v372
      %v405 = vmax.f32 %v341, %v373
      %v406 = vmax.f32 %v342, %v374
      %v407 = vmax.f32 %v343, %v375
      %v408 = vmax.f32 %v344, %v376
      %v409 = vmax.f32 %v345, %v377
      %v410 = vmax.f32 %v346, %v378
      %v411 = vmax.f32 %v347, %v379
      %v412 = vmax.f32 %v348, %v380
      %v413 = vmax.f32 %v349, %v381
      %v414 = vmax.f32 %v350, %v382
      %v415 = vmax.f32 %v351, %v383
      %v416 = vmax.f32 %v352, %v384
      %v417 = vmax.f32 %v353, %v385
      %v418 = vmax.f32 %v354, %v386
      %v419 = vmax.f32 %v355, %v387
      %v420 = vmax.f32 %v356, %v388
      %vm421 = vcmask 64512
      %422 = vst.msk [vmem:[%s213] sm:$0xff] %vm421, %v389
      %423 = vst.msk [vmem:[%s213 + $0x8] sm:$0xff] %vm421, %v390
      %424 = vst.msk [vmem:[%s213 + $0x10] sm:$0xff] %vm421, %v391
      %425 = vst.msk [vmem:[%s213 + $0x18] sm:$0xff] %vm421, %v392
      %426 = vst.msk [vmem:[%s213 + $0x20] sm:$0xff] %vm421, %v393
      %427 = vst.msk [vmem:[%s213 + $0x28] sm:$0xff] %vm421, %v394
      %428 = vst.msk [vmem:[%s213 + $0x30] sm:$0xff] %vm421, %v395
      %429 = vst.msk [vmem:[%s213 + $0x38] sm:$0xff] %vm421, %v396
      %430 = vst.msk [vmem:[%s213 + $0x40] sm:$0xff] %vm421, %v397
      %431 = vst.msk [vmem:[%s213 + $0x48] sm:$0xff] %vm421, %v398
      %432 = vst.msk [vmem:[%s213 + $0x50] sm:$0xff] %vm421, %v399
      %433 = vst.msk [vmem:[%s213 + $0x58] sm:$0xff] %vm421, %v400
      %434 = vst.msk [vmem:[%s213 + $0x60] sm:$0xff] %vm421, %v401
      %435 = vst.msk [vmem:[%s213 + $0x68] sm:$0xff] %vm421, %v402
      %436 = vst.msk [vmem:[%s213 + $0x70] sm:$0xff] %vm421, %v403
      %437 = vst.msk [vmem:[%s213 + $0x78] sm:$0xff] %vm421, %v404
      %438 = vst.msk [vmem:[%s213 + $0x80] sm:$0xff] %vm421, %v405
      %439 = vst.msk [vmem:[%s213 + $0x88] sm:$0xff] %vm421, %v406
      %440 = vst.msk [vmem:[%s213 + $0x90] sm:$0xff] %vm421, %v407
      %441 = vst.msk [vmem:[%s213 + $0x98] sm:$0xff] %vm421, %v408
      %442 = vst.msk [vmem:[%s213 + $0xa0] sm:$0xff] %vm421, %v409
      %443 = vst.msk [vmem:[%s213 + $0xa8] sm:$0xff] %vm421, %v410
      %444 = vst.msk [vmem:[%s213 + $0xb0] sm:$0xff] %vm421, %v411
      %445 = vst.msk [vmem:[%s213 + $0xb8] sm:$0xff] %vm421, %v412
      %446 = vst.msk [vmem:[%s213 + $0xc0] sm:$0xff] %vm421, %v413
      %447 = vst.msk [vmem:[%s213 + $0xc8] sm:$0xff] %vm421, %v414
      %448 = vst.msk [vmem:[%s213 + $0xd0] sm:$0xff] %vm421, %v415
      %449 = vst.msk [vmem:[%s213 + $0xd8] sm:$0xff] %vm421, %v416
      %450 = vst.msk [vmem:[%s213 + $0xe0] sm:$0xff] %vm421, %v417
      %451 = vst.msk [vmem:[%s213 + $0xe8] sm:$0xff] %vm421, %v418
      %452 = vst.msk [vmem:[%s213 + $0xf0] sm:$0xff] %vm421, %v419
      %453 = vst.msk [vmem:[%s213 + $0xf8] sm:$0xff] %vm421, %v420
      %s454 = smul.u32 16, %s19
      %p455 = scmp.lt.s32.totalorder %s18, 1
      %s456 = scalar_select %p455, %s18, 1
      %p457 = scmp.lt.s32.totalorder %s454, 15
      %s458 = scalar_select %p457, %s454, 15
      %s459 = smul.addr %s458, 2
      %s460 = smul.addr %s456, 32
      %s461 = sadd.s32 %s459, %s460
      %s462 = smul.addr %s461, 8
      %s463 = scalar_lea.vmem %s3, %s462
      // Predicated region
      $region33: #{cnn_block_forward.3} parent=31 // pred_check
        %p464 = pneg %p116
      $region34: #{cnn_block_forward.3} parent=31 // pred_check_branch
        %466 = sbr.rel (%p464) target = $region36
      $region35: #{cnn_block_forward.3} parent=31 // pred_region
        %s467 = smul.u32 16, %s19
      $region36: #{cnn_block_forward.3} parent=31 // pred_fallthru
        _
    $region32: #{cnn_block_forward.3} parent=5 // pred_fallthru
      _
    %p468 = scmp.le.s32.totalorder 2, %s9
    // Predicated region
    $region37: #{cnn_block_forward.3} parent=5 // pred_check
      %p469 = pneg %p468
    $region38: #{cnn_block_forward.3} parent=5 // pred_check_branch
      %471 = sbr.rel (%p469) target = $region40
    $region39: #{cnn_block_forward.3} parent=5 // pred_region
      %s472 = ssub.s32 %s9, 2
      // Predicated region
      $region41: #{cnn_block_forward.3} parent=39 // pred_check
        %p473 = pneg %p122
      $region42: #{cnn_block_forward.3} parent=39 // pred_check_branch
        %475 = sbr.rel (%p473) target = $region44
      $region43: #{cnn_block_forward.3} parent=39 // pred_region
        %s476 = smul.u32 16, %s21
        %p477 = scmp.lt.s32.totalorder %s20, 1
        %s478 = scalar_select %p477, %s20, 1
        %p479 = scmp.lt.s32.totalorder %s476, 15
        %s480 = scalar_select %p479, %s476, 15
        %s481 = smul.addr %s480, 2
        %s482 = smul.addr %s478, 32
        %s483 = sadd.s32 %s481, %s482
        %s484 = smul.addr %s483, 8
        %s485 = scalar_lea.vmem %s3, %s484
      $region44: #{cnn_block_forward.3} parent=39 // pred_fallthru
        _
    $region40: #{cnn_block_forward.3} parent=5 // pred_fallthru
      _
  $region6: #{cnn_block_forward.3} parent=0 // loop_footer
    %s13 = sadd.s32 1, %s9
  $region7: #{cnn_block_forward.3} parent=0 // loop_footer_branch
    %8 = sbr.rel target = $region3
  $region8: #{cnn_block_forward.3} parent=0 // loop_exit
    _

// kernel: cnn_block_forward.2
$region0: #{cnn_block_forward.2}
  #allocation0 [shape = 'u32[]', space=smem, size = 0x4, offset = 0x4, fixed_abs, tag = 'smem constant byte address 0x4 - core index']
  #allocation1 [shape = 'u32[144,128]{1,0:T(1,128)}', space=vmem, size = 0x12000, scoped, tag = 'internal scratch']
  %s0 = inlined_call_operand.vmem [shape: bf16[2,18,16,12], index: 0, kind: input, shape index: {}]
  %s1 = inlined_call_operand.vmem [shape: bf16[3,12,128], index: 1, kind: input, shape index: {}]
  %s2 = inlined_call_operand.vmem [shape: bf16[2,16,16,8], index: 2, kind: output, shape index: {0}]
  %s3 = inlined_call_operand.vmem [shape: f32[2,1,1,128], index: 3, kind: output, shape index: {1}]
  %s4 = inlined_call_operand.vmem [shape: f32[2,1,1,128], index: 4, kind: output, shape index: {2}]
  %5 = xla_tuple %s2, %s3, %s4
  %s6 = sld [smem:[#allocation0]]
  $region57: #{cnn_block_forward.2} parent=0
    _
  %s8 = ssub.s32 1, %s6
  %s9 = scalar_select 0, %s8, %s6
  loop: start=0, step=1, limit=4
  $region2: #{cnn_block_forward.2} parent=0 // loop_pre_header
    _
  $region3: #{cnn_block_forward.2} parent=0 // loop_header
    %s11 = sphi 0, %s15
    %p12 = scmp.ge.s32.totalorder %s11, 4
    %s18 = sphi 0, %s30
    %s19 = sphi 0, %s26
    %s20 = sphi 0, %s18
    %s21 = sphi 0, %s19
    %s22 = sphi 0, %s20
    %s23 = sphi 0, %s21
    %s33 = sphi 0, %s35
    %s36 = sphi 0, %s33
    %s37 = sphi 0, %s36
    %s53 = sphi 0, %s37
    %s57 = sphi 0, %s57
    %s59 = sphi 0, %s57
    %s60 = sphi 0, %s59
    %s74 = sphi 0, %s60
    %s82 = sphi 0, %s84
    %s85 = sphi 0, %s82
    %s86 = sphi 0, %s85
    %s102 = sphi 0, %s86
    %s110 = sphi 0, %s112
    %s113 = sphi 0, %s110
    %s114 = sphi 0, %s113
    %s130 = sphi 0, %s114
    %s138 = sphi 0, %s140
    %s141 = sphi 0, %s138
    %s142 = sphi 0, %s141
    %s158 = sphi 0, %s142
  $region4: #{cnn_block_forward.2} parent=0 // loop_header_branch
    %14 = sbr.rel (%p12) target = $region8
  $region5: #{cnn_block_forward.2} parent=0 // loop_body
    %s16 = ssub.s32 %s11, 1
    %s17 = ssub.s32 %s11, 2
    %s24 = sadd.s32 1, %s19
    %p25 = scmp.ge.s32.totalorder %s24, 1
    %s26 = scalar_select %p25, 0, %s24
    %s27 = sadd.s32 1, %s18
    %s28 = scalar_select %p25, %s27, %s18
    %p29 = scmp.ge.s32.totalorder %s28, 2
    %s30 = scalar_select %p29, 0, %s28
    %s31 = ssub.s32 %s18, %s30
    %p32 = scmp.eq.s32.totalorder %s31, 0
    %s34 = sadd.s32 %s33, 1
    %s35 = scalar_select %p32, %s33, %s34
    %p38 = pneg %p32
    %p39 = scmp.eq.s32.totalorder %s11, 1
    %p40 = por %p38, %p39
    %p41 = scmp.ne.s32.totalorder %s33, %s36
    %p42 = scmp.eq.s32.totalorder %s11, 0
    %p43 = por %p41, %p42
    %p44 = scmp.ne.s32.totalorder %s33, %s36
    %p45 = scmp.eq.s32.totalorder %s16, 1
    %p46 = por %p44, %p45
    %p47 = scmp.ne.s32.totalorder %s36, %s37
    %p48 = scmp.eq.s32.totalorder %s16, 0
    %p49 = por %p47, %p48
    %p50 = scmp.ne.s32.totalorder %s36, %s37
    %p51 = scmp.eq.s32.totalorder %s17, 1
    %p52 = por %p50, %p51
    %p54 = scmp.ne.s32.totalorder %s37, %s53
    %p55 = scmp.eq.s32.totalorder %s17, 0
    %p56 = por %p54, %p55
    %s58 = sadd.s32 %s57, 1
    %p61 = scmp.eq.s32.totalorder %s11, 1
    %p62 = scmp.ne.s32.totalorder %s57, %s59
    %p63 = scmp.eq.s32.totalorder %s11, 0
    %p64 = por %p62, %p63
    %p65 = scmp.ne.s32.totalorder %s57, %s59
    %p66 = scmp.eq.s32.totalorder %s16, 1
    %p67 = por %p65, %p66
    %p68 = scmp.ne.s32.totalorder %s59, %s60
    %p69 = scmp.eq.s32.totalorder %s16, 0
    %p70 = por %p68, %p69
    %p71 = scmp.ne.s32.totalorder %s59, %s60
    %p72 = scmp.eq.s32.totalorder %s17, 1
    %p73 = por %p71, %p72
    %p75 = scmp.ne.s32.totalorder %s60, %s74
    %p76 = scmp.eq.s32.totalorder %s17, 0
    %p77 = por %p75, %p76
    %s78 = ssub.s32 %s18, %s30
    %s79 = ssub.s32 %s19, %s26
    %s80 = sor.u32 %s78, %s79
    %p81 = scmp.eq.s32.totalorder %s80, 0
    %s83 = sadd.s32 %s82, 1
    %s84 = scalar_select %p81, %s82, %s83
    %p87 = pneg %p81
    %p88 = scmp.eq.s32.totalorder %s11, 1
    %p89 = por %p87, %p88
    %p90 = scmp.ne.s32.totalorder %s82, %s85
    %p91 = scmp.eq.s32.totalorder %s11, 0
    %p92 = por %p90, %p91
    %p93 = scmp.ne.s32.totalorder %s82, %s85
    %p94 = scmp.eq.s32.totalorder %s16, 1
    %p95 = por %p93, %p94
    %p96 = scmp.ne.s32.totalorder %s85, %s86
    %p97 = scmp.eq.s32.totalorder %s16, 0
    %p98 = por %p96, %p97
    %p99 = scmp.ne.s32.totalorder %s85, %s86
    %p100 = scmp.eq.s32.totalorder %s17, 1
    %p101 = por %p99, %p100
    %p103 = scmp.ne.s32.totalorder %s86, %s102
    %p104 = scmp.eq.s32.totalorder %s17, 0
    %p105 = por %p103, %p104
    %s106 = ssub.s32 %s18, %s30
    %s107 = ssub.s32 %s19, %s26
    %s108 = sor.u32 %s106, %s107
    %p109 = scmp.eq.s32.totalorder %s108, 0
    %s111 = sadd.s32 %s110, 1
    %s112 = scalar_select %p109, %s110, %s111
    %p115 = pneg %p109
    %p116 = scmp.eq.s32.totalorder %s11, 1
    %p117 = por %p115, %p116
    %p118 = scmp.ne.s32.totalorder %s110, %s113
    %p119 = scmp.eq.s32.totalorder %s11, 0
    %p120 = por %p118, %p119
    %p121 = scmp.ne.s32.totalorder %s110, %s113
    %p122 = scmp.eq.s32.totalorder %s16, 1
    %p123 = por %p121, %p122
    %p124 = scmp.ne.s32.totalorder %s113, %s114
    %p125 = scmp.eq.s32.totalorder %s16, 0
    %p126 = por %p124, %p125
    %p127 = scmp.ne.s32.totalorder %s113, %s114
    %p128 = scmp.eq.s32.totalorder %s17, 1
    %p129 = por %p127, %p128
    %p131 = scmp.ne.s32.totalorder %s114, %s130
    %p132 = scmp.eq.s32.totalorder %s17, 0
    %p133 = por %p131, %p132
    %s134 = ssub.s32 %s18, %s30
    %s135 = ssub.s32 %s19, %s26
    %s136 = sor.u32 %s134, %s135
    %p137 = scmp.eq.s32.totalorder %s136, 0
    %s139 = sadd.s32 %s138, 1
    %s140 = scalar_select %p137, %s138, %s139
    %p143 = pneg %p137
    %p144 = scmp.eq.s32.totalorder %s11, 1
    %p145 = por %p143, %p144
    %p146 = scmp.ne.s32.totalorder %s138, %s141
    %p147 = scmp.eq.s32.totalorder %s11, 0
    %p148 = por %p146, %p147
    %p149 = scmp.ne.s32.totalorder %s138, %s141
    %p150 = scmp.eq.s32.totalorder %s16, 1
    %p151 = por %p149, %p150
    %p152 = scmp.ne.s32.totalorder %s141, %s142
    %p153 = scmp.eq.s32.totalorder %s16, 0
    %p154 = por %p152, %p153
    %p155 = scmp.ne.s32.totalorder %s141, %s142
    %p156 = scmp.eq.s32.totalorder %s17, 1
    %p157 = por %p155, %p156
    %p159 = scmp.ne.s32.totalorder %s142, %s158
    %p160 = scmp.eq.s32.totalorder %s17, 0
    %p161 = por %p159, %p160
    %p162 = scmp.le.s32.totalorder 1, %s11
    %p163 = scmp.lt.s32.totalorder %s11, 3
    %p164 = pnand %p162, %p163
    %p165 = pneg %p164
    // Predicated region
    $region9: #{cnn_block_forward.2} parent=5 // pred_check
      _
    $region10: #{cnn_block_forward.2} parent=5 // pred_check_branch
      %167 = sbr.rel (%p164) target = $region12
    $region11: #{cnn_block_forward.2} parent=5 // pred_region
      %s168 = ssub.s32 %s11, 1
      // Predicated region
      $region13: #{cnn_block_forward.2} parent=11 // pred_check
        %p169 = pneg %p70
      $region14: #{cnn_block_forward.2} parent=11 // pred_check_branch
        %171 = sbr.rel (%p169) target = $region16
      $region15: #{cnn_block_forward.2} parent=11 // pred_region
        _
      $region16: #{cnn_block_forward.2} parent=11 // pred_fallthru
        _
    $region12: #{cnn_block_forward.2} parent=5 // pred_fallthru
      _
    %p172 = scmp.lt.s32.totalorder %s11, 2
    // Predicated region
    $region17: #{cnn_block_forward.2} parent=5 // pred_check
      %p173 = pneg %p172
    $region18: #{cnn_block_forward.2} parent=5 // pred_check_branch
      %175 = sbr.rel (%p173) target = $region20
    $region19: #{cnn_block_forward.2} parent=5 // pred_region
      // Predicated region
      $region21: #{cnn_block_forward.2} parent=19 // pred_check
        %p176 = pneg %p43
      $region22: #{cnn_block_forward.2} parent=19 // pred_check_branch
        %178 = sbr.rel (%p176) target = $region24
      $region23: #{cnn_block_forward.2} parent=19 // pred_region
        %p179 = scmp.lt.s32.totalorder %s18, 1
        %s180 = scalar_select %p179, %s18, 1
        %s181 = smul.addr %s180, 36
        %s182 = smul.addr %s181, 4
        %s183 = scalar_lea.vmem %s0, %s182
      $region24: #{cnn_block_forward.2} parent=19 // pred_fallthru
        _
    $region20: #{cnn_block_forward.2} parent=5 // pred_fallthru
      _
    %p184 = scmp.le.s32.totalorder 1, %s11
    %p185 = scmp.lt.s32.totalorder %s11, 3
    %p186 = pnand %p184, %p185
    %p187 = pneg %p186
    // Predicated region
    $region25: #{cnn_block_forward.2} parent=5 // pred_check
      _
    $region26: #{cnn_block_forward.2} parent=5 // pred_check_branch
      %189 = sbr.rel (%p186) target = $region28
    $region27: #{cnn_block_forward.2} parent=5 // pred_region
      %s190 = ssub.s32 %s11, 1
      %p191 = scmp.lt.s32.totalorder %s20, 1
      %s192 = scalar_select %p191, %s20, 1
      %s193 = smul.addr %s192, 36
      %s194 = smul.addr %s193, 4
      %s195 = scalar_lea.vmem %s0, %s194
      %p196 = pneg %p49
      %p197 = pneg %p46
      %p198 = pneg %p70
      %p199 = pneg %p67
      %p200 = pneg %p98
      %p201 = pneg %p95
      %s202 = smul.u32 16, %s21
      %p203 = scmp.lt.s32.totalorder %s20, 1
      %s204 = scalar_select %p203, %s20, 1
      %p205 = scmp.lt.s32.totalorder %s202, 15
      %s206 = scalar_select %p205, %s202, 15
      %s207 = smul.addr %s206, 2
      %s208 = smul.addr %s204, 32
      %s209 = sadd.s32 %s207, %s208
      %s210 = smul.addr %s209, 4
      %s211 = scalar_lea.vmem %s2, %s210
      %p212 = pneg %p126
      %p213 = pneg %p123
      %p214 = scmp.lt.s32.totalorder %s20, 1
      %s215 = scalar_select %p214, %s20, 1
      %p216 = scmp.lt.s32.totalorder %s21, 0
      %s217 = scalar_select %p216, %s21, 0
      %s218 = sadd.s32 %s217, %s215
      %s219 = scalar_lea.vmem %s3, %s218
      %p220 = pneg %p154
      %p221 = pneg %p151
      %p222 = scmp.lt.s32.totalorder %s20, 1
      %s223 = scalar_select %p222, %s20, 1
      %p224 = scmp.lt.s32.totalorder %s21, 0
      %s225 = scalar_select %p224, %s21, 0
      %s226 = sadd.s32 %s225, %s223
      %s227 = scalar_lea.vmem %s4, %s226
      %p228 = scmp.lt.s32.totalorder %s20, 1
      %s229 = scalar_select %p228, %s20, 1
      %s230 = smul.addr %s229, 36
      %s231 = smul.addr %s230, 4
      %s232 = scalar_lea.vmem %s0, %s231
      %s233 = smul.u32 16, %s21
      %p234 = scmp.lt.s32.totalorder %s20, 1
      %s235 = scalar_select %p234, %s20, 1
      %p236 = scmp.lt.s32.totalorder %s233, 15
      %s237 = scalar_select %p236, %s233, 15
      %s238 = smul.addr %s237, 2
      %s239 = smul.addr %s235, 32
      %s240 = sadd.s32 %s238, %s239
      %s241 = smul.addr %s240, 4
      %s242 = scalar_lea.vmem %s2, %s241
      %s243 = smul.u32 16, %s21
      %p244 = scmp.lt.s32.totalorder %s20, 1
      %s245 = scalar_select %p244, %s20, 1
      %p246 = scmp.lt.s32.totalorder %s21, 0
      %s247 = scalar_select %p246, %s21, 0
      %s248 = sadd.s32 %s247, %s245
      %s249 = scalar_lea.vmem %s3, %s248
      %p250 = scmp.lt.s32.totalorder %s20, 1
      %s251 = scalar_select %p250, %s20, 1
      %p252 = scmp.lt.s32.totalorder %s21, 0
      %s253 = scalar_select %p252, %s21, 0
      %s254 = sadd.s32 %s253, %s251
      %s255 = scalar_lea.vmem %s4, %s254
      %s257 = smul.u32 %s21, 16
      %s258 = smul.u32 %s257, 2
      %s259 = smul.addr %s258, 4
      %s260 = scalar_lea.vmem %s232, %s259
      %v261 = vld [vmem:[%s260] sm:$0xf]
      %v262 = vld [vmem:[%s260 + $0x4] sm:$0xf]
      %v263 = vld [vmem:[%s260 + $0x8] sm:$0xf]
      %v264 = vld [vmem:[%s260 + $0xc] sm:$0xf]
      %v265 = vld [vmem:[%s260 + $0x10] sm:$0xf]
      %v266 = vld [vmem:[%s260 + $0x14] sm:$0xf]
      %v267 = vld [vmem:[%s260 + $0x18] sm:$0xf]
      %v268 = vld [vmem:[%s260 + $0x1c] sm:$0xf]
      %v269 = vld [vmem:[%s260 + $0x20] sm:$0xf]
      %v270 = vld [vmem:[%s260 + $0x24] sm:$0xf]
      %v271 = vld [vmem:[%s260 + $0x28] sm:$0xf]
      %v272 = vld [vmem:[%s260 + $0x2c] sm:$0xf]
      %v273 = vld [vmem:[%s260 + $0x30] sm:$0xf]
      %v274 = vld [vmem:[%s260 + $0x34] sm:$0xf]
      %v275 = vld [vmem:[%s260 + $0x38] sm:$0xf]
      %v276 = vld [vmem:[%s260 + $0x3c] sm:$0xf]
      %v277 = vld [vmem:[%s260 + $0x40] sm:$0xf]
      %v278 = vld [vmem:[%s260 + $0x44] sm:$0xf]
      %v279 = vld [vmem:[%s260 + $0x48] sm:$0xf]
      %v280 = vld [vmem:[%s260 + $0x4c] sm:$0xf]
      %v281 = vld [vmem:[%s260 + $0x50] sm:$0xf]
      %v282 = vld [vmem:[%s260 + $0x54] sm:$0xf]
      %v283 = vld [vmem:[%s260 + $0x58] sm:$0xf]
      %v284 = vld [vmem:[%s260 + $0x5c] sm:$0xf]
      %v285 = vld [vmem:[%s260 + $0x60] sm:$0xf]
      %v286 = vld [vmem:[%s260 + $0x64] sm:$0xf]
      %v287 = vld [vmem:[%s260 + $0x68] sm:$0xf]
      %v288 = vld [vmem:[%s260 + $0x6c] sm:$0xf]
      %v289 = vld [vmem:[%s260 + $0x70] sm:$0xf]
      %v290 = vld [vmem:[%s260 + $0x74] sm:$0xf]
      %v291 = vld [vmem:[%s260 + $0x78] sm:$0xf]
      %v292 = vld [vmem:[%s260 + $0x7c] sm:$0xf]
      %v293 = vld [vmem:[%s1] sm:$0xf]
      %v294 = vld [vmem:[%s1 + $0x4] sm:$0x3]
      %s295 = sadd.s32 %s257, 1
      %s296 = smul.u32 %s295, 2
      %s297 = smul.addr %s296, 4
      %s298 = scalar_lea.vmem %s232, %s297
      %v299 = vld [vmem:[%s298] sm:$0xf]
      %v300 = vld [vmem:[%s298 + $0x4] sm:$0xf]
      %v301 = vld [vmem:[%s298 + $0x8] sm:$0xf]
      %v302 = vld [vmem:[%s298 + $0xc] sm:$0xf]
      %v303 = vld [vmem:[%s298 + $0x10] sm:$0xf]
      %v304 = vld [vmem:[%s298 + $0x14] sm:$0xf]
      %v305 = vld [vmem:[%s298 + $0x18] sm:$0xf]
      %v306 = vld [vmem:[%s298 + $0x1c] sm:$0xf]
      %v307 = vld [vmem:[%s298 + $0x20] sm:$0xf]
      %v308 = vld [vmem:[%s298 + $0x24] sm:$0xf]
      %v309 = vld [vmem:[%s298 + $0x28] sm:$0xf]
      %v310 = vld [vmem:[%s298 + $0x2c] sm:$0xf]
      %v311 = vld [vmem:[%s298 + $0x30] sm:$0xf]
      %v312 = vld [vmem:[%s298 + $0x34] sm:$0xf]
      %v313 = vld [vmem:[%s298 + $0x38] sm:$0xf]
      %v314 = vld [vmem:[%s298 + $0x3c] sm:$0xf]
      %v315 = vld [vmem:[%s298 + $0x40] sm:$0xf]
      %v316 = vld [vmem:[%s298 + $0x44] sm:$0xf]
      %v317 = vld [vmem:[%s298 + $0x48] sm:$0xf]
      %v318 = vld [vmem:[%s298 + $0x4c] sm:$0xf]
      %v319 = vld [vmem:[%s298 + $0x50] sm:$0xf]
      %v320 = vld [vmem:[%s298 + $0x54] sm:$0xf]
      %v321 = vld [vmem:[%s298 + $0x58] sm:$0xf]
      %v322 = vld [vmem:[%s298 + $0x5c] sm:$0xf]
      %v323 = vld [vmem:[%s298 + $0x60] sm:$0xf]
      %v324 = vld [vmem:[%s298 + $0x64] sm:$0xf]
      %v325 = vld [vmem:[%s298 + $0x68] sm:$0xf]
      %v326 = vld [vmem:[%s298 + $0x6c] sm:$0xf]
      %v327 = vld [vmem:[%s298 + $0x70] sm:$0xf]
      %v328 = vld [vmem:[%s298 + $0x74] sm:$0xf]
      %v329 = vld [vmem:[%s298 + $0x78] sm:$0xf]
      %v330 = vld [vmem:[%s298 + $0x7c] sm:$0xf]
      %s331 = scalar_lea.vmem %s1, 8
      %v332 = vld [vmem:[%s331] sm:$0xf]
      %v333 = vld [vmem:[%s331 + $0x4] sm:$0x3]
      %v366 = vunpack.c.l.b16 %v299
      %v367 = vunpack.c.l.b16 %v300
      %v368 = vunpack.c.l.b16 %v301
      %v369 = vunpack.c.l.b16 %v302
      %v370 = vunpack.c.l.b16 %v303
      %v371 = vunpack.c.l.b16 %v304
      %v372 = vunpack.c.l.b16 %v305
      %v373 = vunpack.c.l.b16 %v306
      %v374 = vunpack.c.l.b16 %v307
      %v375 = vunpack.c.l.b16 %v308
      %v376 = vunpack.c.l.b16 %v309
      %v377 = vunpack.c.l.b16 %v310
      %v378 = vunpack.c.l.b16 %v311
      %v379 = vunpack.c.l.b16 %v312
      %v380 = vunpack.c.l.b16 %v313
      %v381 = vunpack.c.l.b16 %v314
      %v382 = vunpack.c.l.b16 %v315
      %v383 = vunpack.c.l.b16 %v316
      %v384 = vunpack.c.l.b16 %v317
      %v385 = vunpack.c.l.b16 %v318
      %v386 = vunpack.c.l.b16 %v319
      %v387 = vunpack.c.l.b16 %v320
      %v388 = vunpack.c.l.b16 %v321
      %v389 = vunpack.c.l.b16 %v322
      %v390 = vunpack.c.l.b16 %v323
      %v391 = vunpack.c.l.b16 %v324
      %v392 = vunpack.c.l.b16 %v325
      %v393 = vunpack.c.l.b16 %v326
      %v394 = vunpack.c.l.b16 %v327
      %v395 = vunpack.c.l.b16 %v328
      %v396 = vunpack.c.l.b16 %v329
      %v397 = vunpack.c.l.b16 %v330
      %v398 = vpack.c.b16 %v367, %v366
      %v399 = vpack.c.b16 %v369, %v368
      %v400 = vpack.c.b16 %v371, %v370
      %v401 = vpack.c.b16 %v373, %v372
      %v402 = vpack.c.b16 %v375, %v374
      %v403 = vpack.c.b16 %v377, %v376
      %v404 = vpack.c.b16 %v379, %v378
      %v405 = vpack.c.b16 %v381, %v380
      %v406 = vpack.c.b16 %v383, %v382
      %v407 = vpack.c.b16 %v385, %v384
      %v408 = vpack.c.b16 %v387, %v386
      %v409 = vpack.c.b16 %v389, %v388
      %v410 = vpack.c.b16 %v391, %v390
      %v411 = vpack.c.b16 %v393, %v392
      %v412 = vpack.c.b16 %v395, %v394
      %v413 = vpack.c.b16 %v397, %v396
      %v416 = vunpack.c.l.b16 %v332
      %v417 = vunpack.c.l.b16 %v333
      %v418 = vpack.c.b16 %v417, %v416
      %vm419 = vcmask 97280
      %v421 = vsel %vm419, %v398, 0
      %v424 = vsel %vm419, %v399, 0
      %v427 = vsel %vm419, %v400, 0
      %v430 = vsel %vm419, %v401, 0
      %v433 = vsel %vm419, %v402, 0
      %v436 = vsel %vm419, %v403, 0
      %v439 = vsel %vm419, %v404, 0
      %v442 = vsel %vm419, %v405, 0
      %v445 = vsel %vm419, %v406, 0
      %v448 = vsel %vm419, %v407, 0
      %v451 = vsel %vm419, %v408, 0
      %v454 = vsel %vm419, %v409, 0
      %v457 = vsel %vm419, %v410, 0
      %v460 = vsel %vm419, %v411, 0
      %v463 = vsel %vm419, %v412, 0
      %v466 = vsel %vm419, %v413, 0
      %vm468 = vcmask 1045504
      %v470 = vsel %vm468, %v418, 0
      %472 = vmatprep.subr.bf16.mxu0 0
      %473 = vmatpush1.bf16.msra.mxu0 %v470
      %474 = vmatprep.subr.bf16.mxu0 0
      %475 = vmatpush1.bf16.msra.mxu0 0
      %476 = vmatprep.subr.bf16.mxu0 0
      %477 = vmatpush1.bf16.msra.mxu0 0
      %478 = vmatprep.subr.bf16.mxu0 0
      %479 = vmatpush1.bf16.msra.mxu0 0
      %480 = vmatprep.subr.bf16.mxu0 0
      %481 = vmatpush1.bf16.msra.mxu0 0
      %482 = vmatprep.subr.bf16.mxu0 0
      %483 = vmatpush1.bf16.msra.mxu0 0
      %484 = vmatprep.subr.bf16.mxu0 0
      %485 = vmatpush1.bf16.msra.mxu0 0
      %486 = vmatprep.subr.bf16.mxu0 0
      %487 = vmatpush1.bf16.msra.mxu0 0
      %488 = vmatprep.subr.bf16.mxu0 0
      %489 = vmatpush1.bf16.msra.mxu0 0
      %490 = vmatprep.subr.bf16.mxu0 0
      %491 = vmatpush1.bf16.msra.mxu0 0
      %492 = vmatprep.subr.bf16.mxu0 0
      %493 = vmatpush1.bf16.msra.mxu0 0
      %494 = vmatprep.subr.bf16.mxu0 0
      %495 = vmatpush1.bf16.msra.mxu0 0
      %496 = vmatprep.subr.bf16.mxu0 0
      %497 = vmatpush1.bf16.msra.mxu0 0
      %498 = vmatprep.subr.bf16.mxu0 0
      %499 = vmatpush1.bf16.msra.mxu0 0
      %500 = vmatprep.subr.bf16.mxu0 0
      %501 = vmatpush1.bf16.msra.mxu0 0
      %502 = vmatprep.subr.bf16.mxu0 0
      %503 = vmatpush1.bf16.msra.mxu0 0
      %504 = vmatprep.mubr.bf16.mxu0 0
      %505 = vmatmul.mubr.bf16.gmra.mrb[0].mxu0 %v421
      %v506 = vpop.f32.mrb[0].mxu0
      %v507 = vadd.f32 0.0, %v506
      %v508 = vpop.f32.mrb[0].mxu0
      %v509 = vpop.f32.mrb[0].mxu0
      %v510 = vadd.f32 0.0, %v509
      %v511 = vpop.f32.mrb[0].mxu0
      %512 = vmatprep.mubr.bf16.mxu0 0
      %513 = vmatmul.mubr.bf16.gmra.mrb[0].mxu0 %v424
      %v514 = vpop.f32.mrb[0].mxu0
      %v515 = vadd.f32 0.0, %v514
      %v516 = vpop.f32.mrb[0].mxu0
      %v517 = vpop.f32.mrb[0].mxu0
      %v518 = vadd.f32 0.0, %v517
      %v519 = vpop.f32.mrb[0].mxu0
      %520 = vmatprep.mubr.bf16.mxu0 0
      %521 = vmatmul.mubr.bf16.gmra.mrb[0].mxu0 %v427
      %v522 = vpop.f32.mrb[0].mxu0
      %v523 = vadd.f32 0.0, %v522
      %v524 = vpop.f32.mrb[0].mxu0
      %v525 = vpop.f32.mrb[0].mxu0
      %v526 = vadd.f32 0.0, %v525
      %v527 = vpop.f32.mrb[0].mxu0
      %528 = vmatprep.mubr.bf16.mxu0 0
      %529 = vmatmul.mubr.bf16.gmra.mrb[0].mxu0 %v430
      %v530 = vpop.f32.mrb[0].mxu0
      %v531 = vadd.f32 0.0, %v530
      %v532 = vpop.f32.mrb[0].mxu0
      %v533 = vpop.f32.mrb[0].mxu0
      %v534 = vadd.f32 0.0, %v533
      %v535 = vpop.f32.mrb[0].mxu0
      %536 = vmatprep.mubr.bf16.mxu0 0
      %537 = vmatmul.mubr.bf16.gmra.mrb[0].mxu0 %v433
      %v538 = vpop.f32.mrb[0].mxu0
      %v539 = vadd.f32 0.0, %v538
      %v540 = vpop.f32.mrb[0].mxu0
      %v541 = vpop.f32.mrb[0].mxu0
      %v542 = vadd.f32 0.0, %v541
      %v543 = vpop.f32.mrb[0].mxu0
      %544 = vmatprep.mubr.bf16.mxu0 0
      %545 = vmatmul.mubr.bf16.gmra.mrb[0].mxu0 %v436
      %v546 = vpop.f32.mrb[0].mxu0
      %v547 = vadd.f32 0.0, %v546
      %v548 = vpop.f32.mrb[0].mxu0
      %v549 = vpop.f32.mrb[0].mxu0
      %v550 = vadd.f32 0.0, %v549
      %v551 = vpop.f32.mrb[0].mxu0
      %552 = vmatprep.mubr.bf16.mxu0 0
      %553 = vmatmul.mubr.bf16.gmra.mrb[0].mxu0 %v439
      %v554 = vpop.f32.mrb[0].mxu0
      %v555 = vadd.f32 0.0, %v554
      %v556 = vpop.f32.mrb[0].mxu0
      %v557 = vpop.f32.mrb[0].mxu0
      %v558 = vadd.f32 0.0, %v557
      %v559 = vpop.f32.mrb[0].mxu0
      %560 = vmatprep.mubr.bf16.mxu0 0
      %561 = vmatmul.mubr.bf16.gmra.mrb[0].mxu0 %v442
      %v562 = vpop.f32.mrb[0].mxu0
      %v563 = vadd.f32 0.0, %v562
      %v564 = vpop.f32.mrb[0].mxu0
      %v565 = vpop.f32.mrb[0].mxu0
      %v566 = vadd.f32 0.0, %v565
      %v567 = vpop.f32.mrb[0].mxu0
      %568 = vmatprep.mubr.bf16.mxu0 0
      %569 = vmatmul.mubr.bf16.gmra.mrb[0].mxu0 %v445
      %v570 = vpop.f32.mrb[0].mxu0
      %v571 = vadd.f32 0.0, %v570
      %v572 = vpop.f32.mrb[0].mxu0
      %v573 = vpop.f32.mrb[0].mxu0
      %v574 = vadd.f32 0.0, %v573
      %v575 = vpop.f32.mrb[0].mxu0
      %576 = vmatprep.mubr.bf16.mxu0 0
      %577 = vmatmul.mubr.bf16.gmra.mrb[0].mxu0 %v448
      %v578 = vpop.f32.mrb[0].mxu0
      %v579 = vadd.f32 0.0, %v578
      %v580 = vpop.f32.mrb[0].mxu0
      %v581 = vpop.f32.mrb[0].mxu0
      %v582 = vadd.f32 0.0, %v581
      %v583 = vpop.f32.mrb[0].mxu0
      %584 = vmatprep.mubr.bf16.mxu0 0
      %585 = vmatmul.mubr.bf16.gmra.mrb[0].mxu0 %v451
      %v586 = vpop.f32.mrb[0].mxu0
      %v587 = vadd.f32 0.0, %v586
      %v588 = vpop.f32.mrb[0].mxu0
      %v589 = vpop.f32.mrb[0].mxu0
      %v590 = vadd.f32 0.0, %v589
      %v591 = vpop.f32.mrb[0].mxu0
      %592 = vmatprep.mubr.bf16.mxu0 0
      %593 = vmatmul.mubr.bf16.gmra.mrb[0].mxu0 %v454
      %v594 = vpop.f32.mrb[0].mxu0
      %v595 = vadd.f32 0.0, %v594
      %v596 = vpop.f32.mrb[0].mxu0
      %v597 = vpop.f32.mrb[0].mxu0
      %v598 = vadd.f32 0.0, %v597
      %v599 = vpop.f32.mrb[0].mxu0
      %600 = vmatprep.mubr.bf16.mxu0 0
      %601 = vmatmul.mubr.bf16.gmra.mrb[0].mxu0 %v457
      %v602 = vpop.f32.mrb[0].mxu0
      %v603 = vadd.f32 0.0, %v602
      %v604 = vpop.f32.mrb[0].mxu0
      %v605 = vpop.f32.mrb[0].mxu0
      %v606 = vadd.f32 0.0, %v605
      %v607 = vpop.f32.mrb[0].mxu0
      %608 = vmatprep.mubr.bf16.mxu0 0
      %609 = vmatmul.mubr.bf16.gmra.mrb[0].mxu0 %v460
      %v610 = vpop.f32.mrb[0].mxu0
      %v611 = vadd.f32 0.0, %v610
      %v612 = vpop.f32.mrb[0].mxu0
      %v613 = vpop.f32.mrb[0].mxu0
      %v614 = vadd.f32 0.0, %v613
      %v615 = vpop.f32.mrb[0].mxu0
      %616 = vmatprep.mubr.bf16.mxu0 0
      %617 = vmatmul.mubr.bf16.gmra.mrb[0].mxu0 %v463
      %v618 = vpop.f32.mrb[0].mxu0
      %v619 = vadd.f32 0.0, %v618
      %v620 = vpop.f32.mrb[0].mxu0
      %v621 = vpop.f32.mrb[0].mxu0
      %v622 = vadd.f32 0.0, %v621
      %v623 = vpop.f32.mrb[0].mxu0
      %624 = vmatprep.mubr.bf16.mxu0 0
      %625 = vmatmul.mubr.bf16.gmra.mrb[0].mxu0 %v466
      %v626 = vpop.f32.mrb[0].mxu0
      %v627 = vadd.f32 0.0, %v626
      %v628 = vpop.f32.mrb[0].mxu0
      %v629 = vpop.f32.mrb[0].mxu0
      %v630 = vadd.f32 0.0, %v629
      %v631 = vpop.f32.mrb[0].mxu0
      %632 = vdwg.mxu0
      %v665 = vunpack.c.l.b16 %v261
      %v666 = vunpack.c.l.b16 %v262
      %v667 = vunpack.c.l.b16 %v263
      %v668 = vunpack.c.l.b16 %v264
      %v669 = vunpack.c.l.b16 %v265
      %v670 = vunpack.c.l.b16 %v266
      %v671 = vunpack.c.l.b16 %v267
      %v672 = vunpack.c.l.b16 %v268
      %v673 = vunpack.c.l.b16 %v269
      %v674 = vunpack.c.l.b16 %v270
      %v675 = vunpack.c.l.b16 %v271
      %v676 = vunpack.c.l.b16 %v272
      %v677 = vunpack.c.l.b16 %v273
      %v678 = vunpack.c.l.b16 %v274
      %v679 = vunpack.c.l.b16 %v275
      %v680 = vunpack.c.l.b16 %v276
      %v681 = vunpack.c.l.b16 %v277
      %v682 = vunpack.c.l.b16 %v278
      %v683 = vunpack.c.l.b16 %v279
      %v684 = vunpack.c.l.b16 %v280
      %v685 = vunpack.c.l.b16 %v281
      %v686 = vunpack.c.l.b16 %v282
      %v687 = vunpack.c.l.b16 %v283
      %v688 = vunpack.c.l.b16 %v284
      %v689 = vunpack.c.l.b16 %v285
      %v690 = vunpack.c.l.b16 %v286
      %v691 = vunpack.c.l.b16 %v287
      %v692 = vunpack.c.l.b16 %v288
      %v693 = vunpack.c.l.b16 %v289
      %v694 = vunpack.c.l.b16 %v290
      %v695 = vunpack.c.l.b16 %v291
      %v696 = vunpack.c.l.b16 %v292
      %v697 = vpack.c.b16 %v666, %v665
      %v698 = vpack.c.b16 %v668, %v667
      %v699 = vpack.c.b16 %v670, %v669
      %v700 = vpack.c.b16 %v672, %v671
      %v701 = vpack.c.b16 %v674, %v673
      %v702 = vpack.c.b16 %v676, %v675
      %v703 = vpack.c.b16 %v678, %v677
      %v704 = vpack.c.b16 %v680, %v679
      %v705 = vpack.c.b16 %v682, %v681
      %v706 = vpack.c.b16 %v684, %v683
      %v707 = vpack.c.b16 %v686, %v685
      %v708 = vpack.c.b16 %v688, %v687
      %v709 = vpack.c.b16 %v690, %v689
      %v710 = vpack.c.b16 %v692, %v691
      %v711 = vpack.c.b16 %v694, %v693
      %v712 = vpack.c.b16 %v696, %v695
      %v715 = vunpack.c.l.b16 %v293
      %v716 = vunpack.c.l.b16 %v294
      %v717 = vpack.c.b16 %v716, %v715
      %v719 = vsel %vm419, %v697, 0
      %v722 = vsel %vm419, %v698, 0
      %v725 = vsel %vm419, %v699, 0
      %v728 = vsel %vm419, %v700, 0
      %v731 = vsel %vm419, %v701, 0
      %v734 = vsel %vm419, %v702, 0
      %v737 = vsel %vm419, %v703, 0
      %v740 = vsel %vm419, %v704, 0
      %v743 = vsel %vm419, %v705, 0
      %v746 = vsel %vm419, %v706, 0
      %v749 = vsel %vm419, %v707, 0
      %v752 = vsel %vm419, %v708, 0
      %v755 = vsel %vm419, %v709, 0
      %v758 = vsel %vm419, %v710, 0
      %v761 = vsel %vm419, %v711, 0
      %v764 = vsel %vm419, %v712, 0
      %v767 = vsel %vm468, %v717, 0
      %769 = vmatprep.subr.bf16.mxu0 0
      %770 = vmatpush1.bf16.msra.mxu0 %v767
      %771 = vmatprep.subr.bf16.mxu0 0
      %772 = vmatpush1.bf16.msra.mxu0 0
      %773 = vmatprep.subr.bf16.mxu0 0
      %774 = vmatpush1.bf16.msra.mxu0 0
      %775 = vmatprep.subr.bf16.mxu0 0
      %776 = vmatpush1.bf16.msra.mxu0 0
      %777 = vmatprep.subr.bf16.mxu0 0
      %778 = vmatpush1.bf16.msra.mxu0 0
      %779 = vmatprep.subr.bf16.mxu0 0
      %780 = vmatpush1.bf16.msra.mxu0 0
      %781 = vmatprep.subr.bf16.mxu0 0
      %782 = vmatpush1.bf16.msra.mxu0 0
      %783 = vmatprep.subr.bf16.mxu0 0
      %784 = vmatpush1.bf16.msra.mxu0 0
      %785 = vmatprep.subr.bf16.mxu0 0
      %786 = vmatpush1.bf16.msra.mxu0 0
      %787 = vmatprep.subr.bf16.mxu0 0
      %788 = vmatpush1.bf16.msra.mxu0 0
      %789 = vmatprep.subr.bf16.mxu0 0
      %790 = vmatpush1.bf16.msra.mxu0 0
      %791 = vmatprep.subr.bf16.mxu0 0
      %792 = vmatpush1.bf16.msra.mxu0 0
      %793 = vmatprep.subr.bf16.mxu0 0
      %794 = vmatpush1.bf16.msra.mxu0 0
      %795 = vmatprep.subr.bf16.mxu0 0
      %796 = vmatpush1.bf16.msra.mxu0 0
      %797 = vmatprep.subr.bf16.mxu0 0
      %798 = vmatpush1.bf16.msra.mxu0 0
      %799 = vmatprep.subr.bf16.mxu0 0
      %800 = vmatpush1.bf16.msra.mxu0 0
      %801 = vmatprep.mubr.bf16.mxu0 0
      %802 = vmatmul.mubr.bf16.gmra.mrb[0].mxu0 %v719
      %v803 = vpop.f32.mrb[0].mxu0
      %v804 = vadd.f32 %v507, %v803
      %v805 = vpop.f32.mrb[0].mxu0
      %v806 = vpop.f32.mrb[0].mxu0
      %v807 = vadd.f32 %v510, %v806
      %v808 = vpop.f32.mrb[0].mxu0
      %809 = vmatprep.mubr.bf16.mxu0 0
      %810 = vmatmul.mubr.bf16.gmra.mrb[0].mxu0 %v722
      %v811 = vpop.f32.mrb[0].mxu0
      %v812 = vadd.f32 %v515, %v811
      %v813 = vpop.f32.mrb[0].mxu0
      %v814 = vpop.f32.mrb[0].mxu0
      %v815 = vadd.f32 %v518, %v814
      %v816 = vpop.f32.mrb[0].mxu0
      %817 = vmatprep.mubr.bf16.mxu0 0
      %818 = vmatmul.mubr.bf16.gmra.mrb[0].mxu0 %v725
      %v819 = vpop.f32.mrb[0].mxu0
      %v820 = vadd.f32 %v523, %v819
      %v821 = vpop.f32.mrb[0].mxu0
      %v822 = vpop.f32.mrb[0].mxu0
      %v823 = vadd.f32 %v526, %v822
      %v824 = vpop.f32.mrb[0].mxu0
      %825 = vmatprep.mubr.bf16.mxu0 0
      %826 = vmatmul.mubr.bf16.gmra.mrb[0].mxu0 %v728
      %v827 = vpop.f32.mrb[0].mxu0
      %v828 = vadd.f32 %v531, %v827
      %v829 = vpop.f32.mrb[0].mxu0
      %v830 = vpop.f32.mrb[0].mxu0
      %v831 = vadd.f32 %v534, %v830
      %v832 = vpop.f32.mrb[0].mxu0
      %833 = vmatprep.mubr.bf16.mxu0 0
      %834 = vmatmul.mubr.bf16.gmra.mrb[0].mxu0 %v731
      %v835 = vpop.f32.mrb[0].mxu0
      %v836 = vadd.f32 %v539, %v835
      %v837 = vpop.f32.mrb[0].mxu0
      %v838 = vpop.f32.mrb[0].mxu0
      %v839 = vadd.f32 %v542, %v838
      %v840 = vpop.f32.mrb[0].mxu0
      %841 = vmatprep.mubr.bf16.mxu0 0
      %842 = vmatmul.mubr.bf16.gmra.mrb[0].mxu0 %v734
      %v843 = vpop.f32.mrb[0].mxu0
      %v844 = vadd.f32 %v547, %v843
      %v845 = vpop.f32.mrb[0].mxu0
      %v846 = vpop.f32.mrb[0].mxu0
      %v847 = vadd.f32 %v550, %v846
      %v848 = vpop.f32.mrb[0].mxu0
      %849 = vmatprep.mubr.bf16.mxu0 0
      %850 = vmatmul.mubr.bf16.gmra.mrb[0].mxu0 %v737
      %v851 = vpop.f32.mrb[0].mxu0
      %v852 = vadd.f32 %v555, %v851
      %v853 = vpop.f32.mrb[0].mxu0
      %v854 = vpop.f32.mrb[0].mxu0
      %v855 = vadd.f32 %v558, %v854
      %v856 = vpop.f32.mrb[0].mxu0
      %857 = vmatprep.mubr.bf16.mxu0 0
      %858 = vmatmul.mubr.bf16.gmra.mrb[0].mxu0 %v740
      %v859 = vpop.f32.mrb[0].mxu0
      %v860 = vadd.f32 %v563, %v859
      %v861 = vpop.f32.mrb[0].mxu0
      %v862 = vpop.f32.mrb[0].mxu0
      %v863 = vadd.f32 %v566, %v862
      %v864 = vpop.f32.mrb[0].mxu0
      %865 = vmatprep.mubr.bf16.mxu0 0
      %866 = vmatmul.mubr.bf16.gmra.mrb[0].mxu0 %v743
      %v867 = vpop.f32.mrb[0].mxu0
      %v868 = vadd.f32 %v571, %v867
      %v869 = vpop.f32.mrb[0].mxu0
      %v870 = vpop.f32.mrb[0].mxu0
      %v871 = vadd.f32 %v574, %v870
      %v872 = vpop.f32.mrb[0].mxu0
      %873 = vmatprep.mubr.bf16.mxu0 0
      %874 = vmatmul.mubr.bf16.gmra.mrb[0].mxu0 %v746
      %v875 = vpop.f32.mrb[0].mxu0
      %v876 = vadd.f32 %v579, %v875
      %v877 = vpop.f32.mrb[0].mxu0
      %v878 = vpop.f32.mrb[0].mxu0
      %v879 = vadd.f32 %v582, %v878
      %v880 = vpop.f32.mrb[0].mxu0
      %881 = vmatprep.mubr.bf16.mxu0 0
      %882 = vmatmul.mubr.bf16.gmra.mrb[0].mxu0 %v749
      %v883 = vpop.f32.mrb[0].mxu0
      %v884 = vadd.f32 %v587, %v883
      %v885 = vpop.f32.mrb[0].mxu0
      %v886 = vpop.f32.mrb[0].mxu0
      %v887 = vadd.f32 %v590, %v886
      %v888 = vpop.f32.mrb[0].mxu0
      %889 = vmatprep.mubr.bf16.mxu0 0
      %890 = vmatmul.mubr.bf16.gmra.mrb[0].mxu0 %v752
      %v891 = vpop.f32.mrb[0].mxu0
      %v892 = vadd.f32 %v595, %v891
      %v893 = vpop.f32.mrb[0].mxu0
      %v894 = vpop.f32.mrb[0].mxu0
      %v895 = vadd.f32 %v598, %v894
      %v896 = vpop.f32.mrb[0].mxu0
      %897 = vmatprep.mubr.bf16.mxu0 0
      %898 = vmatmul.mubr.bf16.gmra.mrb[0].mxu0 %v755
      %v899 = vpop.f32.mrb[0].mxu0
      %v900 = vadd.f32 %v603, %v899
      %v901 = vpop.f32.mrb[0].mxu0
      %v902 = vpop.f32.mrb[0].mxu0
      %v903 = vadd.f32 %v606, %v902
      %v904 = vpop.f32.mrb[0].mxu0
      %905 = vmatprep.mubr.bf16.mxu0 0
      %906 = vmatmul.mubr.bf16.gmra.mrb[0].mxu0 %v758
      %v907 = vpop.f32.mrb[0].mxu0
      %v908 = vadd.f32 %v611, %v907
      %v909 = vpop.f32.mrb[0].mxu0
      %v910 = vpop.f32.mrb[0].mxu0
      %v911 = vadd.f32 %v614, %v910
      %v912 = vpop.f32.mrb[0].mxu0
      %913 = vmatprep.mubr.bf16.mxu0 0
      %914 = vmatmul.mubr.bf16.gmra.mrb[0].mxu0 %v761
      %v915 = vpop.f32.mrb[0].mxu0
      %v916 = vadd.f32 %v619, %v915
      %v917 = vpop.f32.mrb[0].mxu0
      %v918 = vpop.f32.mrb[0].mxu0
      %v919 = vadd.f32 %v622, %v918
      %v920 = vpop.f32.mrb[0].mxu0
      %921 = vmatprep.mubr.bf16.mxu0 0
      %922 = vmatmul.mubr.bf16.gmra.mrb[0].mxu0 %v764
      %v923 = vpop.f32.mrb[0].mxu0
      %v924 = vadd.f32 %v627, %v923
      %v925 = vpop.f32.mrb[0].mxu0
      %v926 = vpop.f32.mrb[0].mxu0
      %v927 = vadd.f32 %v630, %v926
      %v928 = vpop.f32.mrb[0].mxu0
      %929 = vdwg.mxu0
      %s930 = sadd.s32 %s257, 2
      %s931 = smul.u32 %s930, 2
      %s932 = smul.addr %s931, 4
      %s933 = scalar_lea.vmem %s232, %s932
      %v934 = vld [vmem:[%s933] sm:$0xf]
      %v935 = vld [vmem:[%s933 + $0x4] sm:$0xf]
      %v936 = vld [vmem:[%s933 + $0x8] sm:$0xf]
      %v937 = vld [vmem:[%s933 + $0xc] sm:$0xf]
      %v938 = vld [vmem:[%s933 + $0x10] sm:$0xf]
      %v939 = vld [vmem:[%s933 + $0x14] sm:$0xf]
      %v940 = vld [vmem:[%s933 + $0x18] sm:$0xf]
      %v941 = vld [vmem:[%s933 + $0x1c] sm:$0xf]
      %v942 = vld [vmem:[%s933 + $0x20] sm:$0xf]
      %v943 = vld [vmem:[%s933 + $0x24] sm:$0xf]
      %v944 = vld [vmem:[%s933 + $0x28] sm:$0xf]
      %v945 = vld [vmem:[%s933 + $0x2c] sm:$0xf]
      %v946 = vld [vmem:[%s933 + $0x30] sm:$0xf]
      %v947 = vld [vmem:[%s933 + $0x34] sm:$0xf]
      %v948 = vld [vmem:[%s933 + $0x38] sm:$0xf]
      %v949 = vld [vmem:[%s933 + $0x3c] sm:$0xf]
      %v950 = vld [vmem:[%s933 + $0x40] sm:$0xf]
      %v951 = vld [vmem:[%s933 + $0x44] sm:$0xf]
      %v952 = vld [vmem:[%s933 + $0x48] sm:$0xf]
      %v953 = vld [vmem:[%s933 + $0x4c] sm:$0xf]
      %v954 = vld [vmem:[%s933 + $0x50] sm:$0xf]
      %v955 = vld [vmem:[%s933 + $0x54] sm:$0xf]
      %v956 = vld [vmem:[%s933 + $0x58] sm:$0xf]
      %v957 = vld [vmem:[%s933 + $0x5c] sm:$0xf]
      %v958 = vld [vmem:[%s933 + $0x60] sm:$0xf]
      %v959 = vld [vmem:[%s933 + $0x64] sm:$0xf]
      %v960 = vld [vmem:[%s933 + $0x68] sm:$0xf]
      %v961 = vld [vmem:[%s933 + $0x6c] sm:$0xf]
      %v962 = vld [vmem:[%s933 + $0x70] sm:$0xf]
      %v963 = vld [vmem:[%s933 + $0x74] sm:$0xf]
      %v964 = vld [vmem:[%s933 + $0x78] sm:$0xf]
      %v965 = vld [vmem:[%s933 + $0x7c] sm:$0xf]
      %s966 = scalar_lea.vmem %s1, 16
      %v967 = vld [vmem:[%s966] sm:$0xf]
      %v968 = vld [vmem:[%s966 + $0x4] sm:$0x3]
      %v1001 = vunpack.c.l.b16 %v934
      %v1002 = vunpack.c.l.b16 %v935
      %v1003 = vunpack.c.l.b16 %v936
      %v1004 = vunpack.c.l.b16 %v937
      %v1005 = vunpack.c.l.b16 %v938
      %v1006 = vunpack.c.l.b16 %v939
      %v1007 = vunpack.c.l.b16 %v940
      %v1008 = vunpack.c.l.b16 %v941
      %v1009 = vunpack.c.l.b16 %v942
      %v1010 = vunpack.c.l.b16 %v943
      %v1011 = vunpack.c.l.b16 %v944
      %v1012 = vunpack.c.l.b16 %v945
      %v1013 = vunpack.c.l.b16 %v946
      %v1014 = vunpack.c.l.b16 %v947
      %v1015 = vunpack.c.l.b16 %v948
      %v1016 = vunpack.c.l.b16 %v949
      %v1017 = vunpack.c.l.b16 %v950
      %v1018 = vunpack.c.l.b16 %v951
      %v1019 = vunpack.c.l.b16 %v952
      %v1020 = vunpack.c.l.b16 %v953
      %v1021 = vunpack.c.l.b16 %v954
      %v1022 = vunpack.c.l.b16 %v955
      %v1023 = vunpack.c.l.b16 %v956
      %v1024 = vunpack.c.l.b16 %v957
      %v1025 = vunpack.c.l.b16 %v958
      %v1026 = vunpack.c.l.b16 %v959
      %v1027 = vunpack.c.l.b16 %v960
      %v1028 = vunpack.c.l.b16 %v961
      %v1029 = vunpack.c.l.b16 %v962
      %v1030 = vunpack.c.l.b16 %v963
      %v1031 = vunpack.c.l.b16 %v964
      %v1032 = vunpack.c.l.b16 %v965
      %v1033 = vpack.c.b16 %v1002, %v1001
      %v1034 = vpack.c.b16 %v1004, %v1003
      %v1035 = vpack.c.b16 %v1006, %v1005
      %v1036 = vpack.c.b16 %v1008, %v1007
      %v1037 = vpack.c.b16 %v1010, %v1009
      %v1038 = vpack.c.b16 %v1012, %v1011
      %v1039 = vpack.c.b16 %v1014, %v1013
      %v1040 = vpack.c.b16 %v1016, %v1015
      %v1041 = vpack.c.b16 %v1018, %v1017
      %v1042 = vpack.c.b16 %v1020, %v1019
      %v1043 = vpack.c.b16 %v1022, %v1021
      %v1044 = vpack.c.b16 %v1024, %v1023
      %v1045 = vpack.c.b16 %v1026, %v1025
      %v1046 = vpack.c.b16 %v1028, %v1027
      %v1047 = vpack.c.b16 %v1030, %v1029
      %v1048 = vpack.c.b16 %v1032, %v1031
      %v1051 = vunpack.c.l.b16 %v967
      %v1052 = vunpack.c.l.b16 %v968
      %v1053 = vpack.c.b16 %v1052, %v1051
      %v1055 = vsel %vm419, %v1033, 0
      %v1058 = vsel %vm419, %v1034, 0
      %v1061 = vsel %vm419, %v1035, 0
      %v1064 = vsel %vm419, %v1036, 0
      %v1067 = vsel %vm419, %v1037, 0
      %v1070 = vsel %vm419, %v1038, 0
      %v1073 = vsel %vm419, %v1039, 0
      %v1076 = vsel %vm419, %v1040, 0
      %v1079 = vsel %vm419, %v1041, 0
      %v1082 = vsel %vm419, %v1042, 0
      %v1085 = vsel %vm419, %v1043, 0
      %v1088 = vsel %vm419, %v1044, 0
      %v1091 = vsel %vm419, %v1045, 0
      %v1094 = vsel %vm419, %v1046, 0
      %v1097 = vsel %vm419, %v1047, 0
      %v1100 = vsel %vm419, %v1048, 0
      %v1103 = vsel %vm468, %v1053, 0
      %1105 = vmatprep.subr.bf16.mxu0 0
      %1106 = vmatpush1.bf16.msra.mxu0 %v1103
      %1107 = vmatprep.subr.bf16.mxu0 0
      %1108 = vmatpush1.bf16.msra.mxu0 0
      %1109 = vmatprep.subr.bf16.mxu0 0
      %1110 = vmatpush1.bf16.msra.mxu0 0
      %1111 = vmatprep.subr.bf16.mxu0 0
      %1112 = vmatpush1.bf16.msra.mxu0 0
      %1113 = vmatprep.subr.bf16.mxu0 0
      %1114 = vmatpush1.bf16.msra.mxu0 0
      %1115 = vmatprep.subr.bf16.mxu0 0
      %1116 = vmatpush1.bf16.msra.mxu0 0
      %1117 = vmatprep.subr.bf16.mxu0 0
      %1118 = vmatpush1.bf16.msra.mxu0 0
      %1119 = vmatprep.subr.bf16.mxu0 0
      %1120 = vmatpush1.bf16.msra.mxu0 0
      %1121 = vmatprep.subr.bf16.mxu0 0
      %1122 = vmatpush1.bf16.msra.mxu0 0
      %1123 = vmatprep.subr.bf16.mxu0 0
      %1124 = vmatpush1.bf16.msra.mxu0 0
      %1125 = vmatprep.subr.bf16.mxu0 0
      %1126 = vmatpush1.bf16.msra.mxu0 0
      %1127 = vmatprep.subr.bf16.mxu0 0
      %1128 = vmatpush1.bf16.msra.mxu0 0
      %1129 = vmatprep.subr.bf16.mxu0 0
      %1130 = vmatpush1.bf16.msra.mxu0 0
      %1131 = vmatprep.subr.bf16.mxu0 0
      %1132 = vmatpush1.bf16.msra.mxu0 0
      %1133 = vmatprep.subr.bf16.mxu0 0
      %1134 = vmatpush1.bf16.msra.mxu0 0
      %1135 = vmatprep.subr.bf16.mxu0 0
      %1136 = vmatpush1.bf16.msra.mxu0 0
      %1137 = vmatprep.mubr.bf16.mxu0 0
      %1138 = vmatmul.mubr.bf16.gmra.mrb[0].mxu0 %v1055
      %v1139 = vpop.f32.mrb[0].mxu0
      %v1140 = vadd.f32 0.0, %v1139
      %v1141 = vpop.f32.mrb[0].mxu0
      %v1142 = vpop.f32.mrb[0].mxu0
      %v1143 = vadd.f32 0.0, %v1142
      %v1144 = vpop.f32.mrb[0].mxu0
      %1145 = vmatprep.mubr.bf16.mxu0 0
      %1146 = vmatmul.mubr.bf16.gmra.mrb[0].mxu0 %v1058
      %v1147 = vpop.f32.mrb[0].mxu0
      %v1148 = vadd.f32 0.0, %v1147
      %v1149 = vpop.f32.mrb[0].mxu0
      %v1150 = vpop.f32.mrb[0].mxu0
      %v1151 = vadd.f32 0.0, %v1150
      %v1152 = vpop.f32.mrb[0].mxu0
      %1153 = vmatprep.mubr.bf16.mxu0 0
      %1154 = vmatmul.mubr.bf16.gmra.mrb[0].mxu0 %v1061
      %v1155 = vpop.f32.mrb[0].mxu0
      %v1156 = vadd.f32 0.0, %v1155
      %v1157 = vpop.f32.mrb[0].mxu0
      %v1158 = vpop.f32.mrb[0].mxu0
      %v1159 = vadd.f32 0.0, %v1158
      %v1160 = vpop.f32.mrb[0].mxu0
      %1161 = vmatprep.mubr.bf16.mxu0 0
      %1162 = vmatmul.mubr.bf16.gmra.mrb[0].mxu0 %v1064
      %v1163 = vpop.f32.mrb[0].mxu0
      %v1164 = vadd.f32 0.0, %v1163
      %v1165 = vpop.f32.mrb[0].mxu0
      %v1166 = vpop.f32.mrb[0].mxu0
      %v1167 = vadd.f32 0.0, %v1166
      %v1168 = vpop.f32.mrb[0].mxu0
      %1169 = vmatprep.mubr.bf16.mxu0 0
      %1170 = vmatmul.mubr.bf16.gmra.mrb[0].mxu0 %v1067
      %v1171 = vpop.f32.mrb[0].mxu0
      %v1172 = vadd.f32 0.0, %v1171
      %v1173 = vpop.f32.mrb[0].mxu0
      %v1174 = vpop.f32.mrb[0].mxu0
      %v1175 = vadd.f32 0.0, %v1174
      %v1176 = vpop.f32.mrb[0].mxu0
      %1177 = vmatprep.mubr.bf16.mxu0 0
      %1178 = vmatmul.mubr.bf16.gmra.mrb[0].mxu0 %v1070
      %v1179 = vpop.f32.mrb[0].mxu0
      %v1180 = vadd.f32 0.0, %v1179
      %v1181 = vpop.f32.mrb[0].mxu0
      %v1182 = vpop.f32.mrb[0].mxu0
      %v1183 = vadd.f32 0.0, %v1182
      %v1184 = vpop.f32.mrb[0].mxu0
      %1185 = vmatprep.mubr.bf16.mxu0 0
      %1186 = vmatmul.mubr.bf16.gmra.mrb[0].mxu0 %v1073
      %v1187 = vpop.f32.mrb[0].mxu0
      %v1188 = vadd.f32 0.0, %v1187
      %v1189 = vpop.f32.mrb[0].mxu0
      %v1190 = vpop.f32.mrb[0].mxu0
      %v1191 = vadd.f32 0.0, %v1190
      %v1192 = vpop.f32.mrb[0].mxu0
      %1193 = vmatprep.mubr.bf16.mxu0 0
      %1194 = vmatmul.mubr.bf16.gmra.mrb[0].mxu0 %v1076
      %v1195 = vpop.f32.mrb[0].mxu0
      %v1196 = vadd.f32 0.0, %v1195
      %v1197 = vpop.f32.mrb[0].mxu0
      %v1198 = vpop.f32.mrb[0].mxu0
      %v1199 = vadd.f32 0.0, %v1198
      %v1200 = vpop.f32.mrb[0].mxu0
      %1201 = vmatprep.mubr.bf16.mxu0 0
      %1202 = vmatmul.mubr.bf16.gmra.mrb[0].mxu0 %v1079
      %v1203 = vpop.f32.mrb[0].mxu0
      %v1204 = vadd.f32 0.0, %v1203
      %v1205 = vpop.f32.mrb[0].mxu0
      %v1206 = vpop.f32.mrb[0].mxu0
      %v1207 = vadd.f32 0.0, %v1206
      %v1208 = vpop.f32.mrb[0].mxu0
      %1209 = vmatprep.mubr.bf16.mxu0 0
      %1210 = vmatmul.mubr.bf16.gmra.mrb[0].mxu0 %v1082
      %v1211 = vpop.f32.mrb[0].mxu0
      %v1212 = vadd.f32 0.0, %v1211
      %v1213 = vpop.f32.mrb[0].mxu0
      %v1214 = vpop.f32.mrb[0].mxu0
      %v1215 = vadd.f32 0.0, %v1214
      %v1216 = vpop.f32.mrb[0].mxu0
      %1217 = vmatprep.mubr.bf16.mxu0 0
      %1218 = vmatmul.mubr.bf16.gmra.mrb[0].mxu0 %v1085
      %v1219 = vpop.f32.mrb[0].mxu0
      %v1220 = vadd.f32 0.0, %v1219
      %v1221 = vpop.f32.mrb[0].mxu0
      %v1222 = vpop.f32.mrb[0].mxu0
      %v1223 = vadd.f32 0.0, %v1222
      %v1224 = vpop.f32.mrb[0].mxu0
      %1225 = vmatprep.mubr.bf16.mxu0 0
      %1226 = vmatmul.mubr.bf16.gmra.mrb[0].mxu0 %v1088
      %v1227 = vpop.f32.mrb[0].mxu0
      %v1228 = vadd.f32 0.0, %v1227
      %v1229 = vpop.f32.mrb[0].mxu0
      %v1230 = vpop.f32.mrb[0].mxu0
      %v1231 = vadd.f32 0.0, %v1230
      %v1232 = vpop.f32.mrb[0].mxu0
      %1233 = vmatprep.mubr.bf16.mxu0 0
      %1234 = vmatmul.mubr.bf16.gmra.mrb[0].mxu0 %v1091
      %v1235 = vpop.f32.mrb[0].mxu0
      %v1236 = vadd.f32 0.0, %v1235
      %v1237 = vpop.f32.mrb[0].mxu0
      %v1238 = vpop.f32.mrb[0].mxu0
      %v1239 = vadd.f32 0.0, %v1238
      %v1240 = vpop.f32.mrb[0].mxu0
      %1241 = vmatprep.mubr.bf16.mxu0 0
      %1242 = vmatmul.mubr.bf16.gmra.mrb[0].mxu0 %v1094
      %v1243 = vpop.f32.mrb[0].mxu0
      %v1244 = vadd.f32 0.0, %v1243
      %v1245 = vpop.f32.mrb[0].mxu0
      %v1246 = vpop.f32.mrb[0].mxu0
      %v1247 = vadd.f32 0.0, %v1246
      %v1248 = vpop.f32.mrb[0].mxu0
      %1249 = vmatprep.mubr.bf16.mxu0 0
      %1250 = vmatmul.mubr.bf16.gmra.mrb[0].mxu0 %v1097
      %v1251 = vpop.f32.mrb[0].mxu0
      %v1252 = vadd.f32 0.0, %v1251
      %v1253 = vpop.f32.mrb[0].mxu0
      %v1254 = vpop.f32.mrb[0].mxu0
      %v1255 = vadd.f32 0.0, %v1254
      %v1256 = vpop.f32.mrb[0].mxu0
      %1257 = vmatprep.mubr.bf16.mxu0 0
      %1258 = vmatmul.mubr.bf16.gmra.mrb[0].mxu0 %v1100
      %v1259 = vpop.f32.mrb[0].mxu0
      %v1260 = vadd.f32 0.0, %v1259
      %v1261 = vpop.f32.mrb[0].mxu0
      %v1262 = vpop.f32.mrb[0].mxu0
      %v1263 = vadd.f32 0.0, %v1262
      %v1264 = vpop.f32.mrb[0].mxu0
      %1265 = vdwg.mxu0
      %v1266 = vadd.f32 %v804, %v1140
      %v1267 = vadd.f32 %v807, %v1143
      %v1268 = vadd.f32 %v812, %v1148
      %v1269 = vadd.f32 %v815, %v1151
      %v1270 = vadd.f32 %v820, %v1156
      %v1271 = vadd.f32 %v823, %v1159
      %v1272 = vadd.f32 %v828, %v1164
      %v1273 = vadd.f32 %v831, %v1167
      %v1274 = vadd.f32 %v836, %v1172
      %v1275 = vadd.f32 %v839, %v1175
      %v1276 = vadd.f32 %v844, %v1180
      %v1277 = vadd.f32 %v847, %v1183
      %v1278 = vadd.f32 %v852, %v1188
      %v1279 = vadd.f32 %v855, %v1191
      %v1280 = vadd.f32 %v860, %v1196
      %v1281 = vadd.f32 %v863, %v1199
      %v1282 = vadd.f32 %v868, %v1204
      %v1283 = vadd.f32 %v871, %v1207
      %v1284 = vadd.f32 %v876, %v1212
      %v1285 = vadd.f32 %v879, %v1215
      %v1286 = vadd.f32 %v884, %v1220
      %v1287 = vadd.f32 %v887, %v1223
      %v1288 = vadd.f32 %v892, %v1228
      %v1289 = vadd.f32 %v895, %v1231
      %v1290 = vadd.f32 %v900, %v1236
      %v1291 = vadd.f32 %v903, %v1239
      %v1292 = vadd.f32 %v908, %v1244
      %v1293 = vadd.f32 %v911, %v1247
      %v1294 = vadd.f32 %v916, %v1252
      %v1295 = vadd.f32 %v919, %v1255
      %v1296 = vadd.f32 %v924, %v1260
      %v1297 = vadd.f32 %v927, %v1263
      %v1298 = vadd.f32 %v1266, %v1267
      %v1299 = vadd.f32 %v1298, %v1268
      %v1300 = vadd.f32 %v1299, %v1269
      %v1301 = vadd.f32 %v1300, %v1270
      %v1302 = vadd.f32 %v1301, %v1271
      %v1303 = vadd.f32 %v1302, %v1272
      %v1304 = vadd.f32 %v1303, %v1273
      %v1305 = vadd.f32 %v1304, %v1274
      %v1306 = vadd.f32 %v1305, %v1275
      %v1307 = vadd.f32 %v1306, %v1276
      %v1308 = vadd.f32 %v1307, %v1277
      %v1309 = vadd.f32 %v1308, %v1278
      %v1310 = vadd.f32 %v1309, %v1279
      %v1311 = vadd.f32 %v1310, %v1280
      %v1312 = vadd.f32 %v1311, %v1281
      %v1313 = vadd.f32 %v1312, %v1282
      %v1314 = vadd.f32 %v1313, %v1283
      %v1315 = vadd.f32 %v1314, %v1284
      %v1316 = vadd.f32 %v1315, %v1285
      %v1317 = vadd.f32 %v1316, %v1286
      %v1318 = vadd.f32 %v1317, %v1287
      %v1319 = vadd.f32 %v1318, %v1288
      %v1320 = vadd.f32 %v1319, %v1289
      %v1321 = vadd.f32 %v1320, %v1290
      %v1322 = vadd.f32 %v1321, %v1291
      %v1323 = vadd.f32 %v1322, %v1292
      %v1324 = vadd.f32 %v1323, %v1293
      %v1325 = vadd.f32 %v1324, %v1294
      %v1326 = vadd.f32 %v1325, %v1295
      %v1327 = vadd.f32 %v1326, %v1296
      %v1328 = vadd.f32 %v1327, %v1297
      %v1329 = vrot.slane %v1328, 4
      %v1330 = vadd.f32 %v1328, %v1329
      %v1331 = vrot.slane %v1330, 2
      %v1332 = vadd.f32 %v1330, %v1331
      %v1333 = vrot.slane %v1332, 1
      %v1334 = vadd.f32 %v1332, %v1333
      %1335 = vst [vmem:[%s249] sm:$0x1] %v1334
      %v1336 = vmul.f32 %v1266, %v1266
      %v1337 = vmul.f32 %v1267, %v1267
      %v1338 = vmul.f32 %v1268, %v1268
      %v1339 = vmul.f32 %v1269, %v1269
      %v1340 = vmul.f32 %v1270, %v1270
      %v1341 = vmul.f32 %v1271, %v1271
      %v1342 = vmul.f32 %v1272, %v1272
      %v1343 = vmul.f32 %v1273, %v1273
      %v1344 = vmul.f32 %v1274, %v1274
      %v1345 = vmul.f32 %v1275, %v1275
      %v1346 = vmul.f32 %v1276, %v1276
      %v1347 = vmul.f32 %v1277, %v1277
      %v1348 = vmul.f32 %v1278, %v1278
      %v1349 = vmul.f32 %v1279, %v1279
      %v1350 = vmul.f32 %v1280, %v1280
      %v1351 = vmul.f32 %v1281, %v1281
      %v1352 = vmul.f32 %v1282, %v1282
      %v1353 = vmul.f32 %v1283, %v1283
      %v1354 = vmul.f32 %v1284, %v1284
      %v1355 = vmul.f32 %v1285, %v1285
      %v1356 = vmul.f32 %v1286, %v1286
      %v1357 = vmul.f32 %v1287, %v1287
      %v1358 = vmul.f32 %v1288, %v1288
      %v1359 = vmul.f32 %v1289, %v1289
      %v1360 = vmul.f32 %v1290, %v1290
      %v1361 = vmul.f32 %v1291, %v1291
      %v1362 = vmul.f32 %v1292, %v1292
      %v1363 = vmul.f32 %v1293, %v1293
      %v1364 = vmul.f32 %v1294, %v1294
      %v1365 = vmul.f32 %v1295, %v1295
      %v1366 = vmul.f32 %v1296, %v1296
      %v1367 = vmul.f32 %v1297, %v1297
      %v1368 = vadd.f32 %v1336, %v1337
      %v1369 = vadd.f32 %v1368, %v1338
      %v1370 = vadd.f32 %v1369, %v1339
      %v1371 = vadd.f32 %v1370, %v1340
      %v1372 = vadd.f32 %v1371, %v1341
      %v1373 = vadd.f32 %v1372, %v1342
      %v1374 = vadd.f32 %v1373, %v1343
      %v1375 = vadd.f32 %v1374, %v1344
      %v1376 = vadd.f32 %v1375, %v1345
      %v1377 = vadd.f32 %v1376, %v1346
      %v1378 = vadd.f32 %v1377, %v1347
      %v1379 = vadd.f32 %v1378, %v1348
      %v1380 = vadd.f32 %v1379, %v1349
      %v1381 = vadd.f32 %v1380, %v1350
      %v1382 = vadd.f32 %v1381, %v1351
      %v1383 = vadd.f32 %v1382, %v1352
      %v1384 = vadd.f32 %v1383, %v1353
      %v1385 = vadd.f32 %v1384, %v1354
      %v1386 = vadd.f32 %v1385, %v1355
      %v1387 = vadd.f32 %v1386, %v1356
      %v1388 = vadd.f32 %v1387, %v1357
      %v1389 = vadd.f32 %v1388, %v1358
      %v1390 = vadd.f32 %v1389, %v1359
      %v1391 = vadd.f32 %v1390, %v1360
      %v1392 = vadd.f32 %v1391, %v1361
      %v1393 = vadd.f32 %v1392, %v1362
      %v1394 = vadd.f32 %v1393, %v1363
      %v1395 = vadd.f32 %v1394, %v1364
      %v1396 = vadd.f32 %v1395, %v1365
      %v1397 = vadd.f32 %v1396, %v1366
      %v1398 = vadd.f32 %v1397, %v1367
      %v1399 = vrot.slane %v1398, 4
      %v1400 = vadd.f32 %v1398, %v1399
      %v1401 = vrot.slane %v1400, 2
      %v1402 = vadd.f32 %v1400, %v1401
      %v1403 = vrot.slane %v1402, 1
      %v1404 = vadd.f32 %v1402, %v1403
      %1405 = vst [vmem:[%s255] sm:$0x1] %v1404
      %v1406 = vpack.c.bf16 %v1267, %v1266
      %v1407 = vpack.c.bf16 %v1269, %v1268
      %v1408 = vpack.c.bf16 %v1271, %v1270
      %v1409 = vpack.c.bf16 %v1273, %v1272
      %v1410 = vpack.c.bf16 %v1275, %v1274
      %v1411 = vpack.c.bf16 %v1277, %v1276
      %v1412 = vpack.c.bf16 %v1279, %v1278
      %v1413 = vpack.c.bf16 %v1281, %v1280
      %v1414 = vpack.c.bf16 %v1283, %v1282
      %v1415 = vpack.c.bf16 %v1285, %v1284
      %v1416 = vpack.c.bf16 %v1287, %v1286
      %v1417 = vpack.c.bf16 %v1289, %v1288
      %v1418 = vpack.c.bf16 %v1291, %v1290
      %v1419 = vpack.c.bf16 %v1293, %v1292
      %v1420 = vpack.c.bf16 %v1295, %v1294
      %v1421 = vpack.c.bf16 %v1297, %v1296
      %v1438 = vunpack.c.l.b16 %v1406
      %v1439 = vunpack.c.h.b16 %v1406
      %v1440 = vunpack.c.l.b16 %v1407
      %v1441 = vunpack.c.h.b16 %v1407
      %v1442 = vunpack.c.l.b16 %v1408
      %v1443 = vunpack.c.h.b16 %v1408
      %v1444 = vunpack.c.l.b16 %v1409
      %v1445 = vunpack.c.h.b16 %v1409
      %v1446 = vunpack.c.l.b16 %v1410
      %v1447 = vunpack.c.h.b16 %v1410
      %v1448 = vunpack.c.l.b16 %v1411
      %v1449 = vunpack.c.h.b16 %v1411
      %v1450 = vunpack.c.l.b16 %v1412
      %v1451 = vunpack.c.h.b16 %v1412
      %v1452 = vunpack.c.l.b16 %v1413
      %v1453 = vunpack.c.h.b16 %v1413
      %v1454 = vunpack.c.l.b16 %v1414
      %v1455 = vunpack.c.h.b16 %v1414
      %v1456 = vunpack.c.l.b16 %v1415
      %v1457 = vunpack.c.h.b16 %v1415
      %v1458 = vunpack.c.l.b16 %v1416
      %v1459 = vunpack.c.h.b16 %v1416
      %v1460 = vunpack.c.l.b16 %v1417
      %v1461 = vunpack.c.h.b16 %v1417
      %v1462 = vunpack.c.l.b16 %v1418
      %v1463 = vunpack.c.h.b16 %v1418
      %v1464 = vunpack.c.l.b16 %v1419
      %v1465 = vunpack.c.h.b16 %v1419
      %v1466 = vunpack.c.l.b16 %v1420
      %v1467 = vunpack.c.h.b16 %v1420
      %v1468 = vunpack.c.l.b16 %v1421
      %v1469 = vunpack.c.h.b16 %v1421
      %v1470 = vpack.c.b16 %v1438, %v1438
      %v1471 = vpack.c.b16 %v1439, %v1439
      %v1472 = vpack.c.b16 %v1440, %v1440
      %v1473 = vpack.c.b16 %v1441, %v1441
      %v1474 = vpack.c.b16 %v1442, %v1442
      %v1475 = vpack.c.b16 %v1443, %v1443
      %v1476 = vpack.c.b16 %v1444, %v1444
      %v1477 = vpack.c.b16 %v1445, %v1445
      %v1478 = vpack.c.b16 %v1446, %v1446
      %v1479 = vpack.c.b16 %v1447, %v1447
      %v1480 = vpack.c.b16 %v1448, %v1448
      %v1481 = vpack.c.b16 %v1449, %v1449
      %v1482 = vpack.c.b16 %v1450, %v1450
      %v1483 = vpack.c.b16 %v1451, %v1451
      %v1484 = vpack.c.b16 %v1452, %v1452
      %v1485 = vpack.c.b16 %v1453, %v1453
      %v1486 = vpack.c.b16 %v1454, %v1454
      %v1487 = vpack.c.b16 %v1455, %v1455
      %v1488 = vpack.c.b16 %v1456, %v1456
      %v1489 = vpack.c.b16 %v1457, %v1457
      %v1490 = vpack.c.b16 %v1458, %v1458
      %v1491 = vpack.c.b16 %v1459, %v1459
      %v1492 = vpack.c.b16 %v1460, %v1460
      %v1493 = vpack.c.b16 %v1461, %v1461
      %v1494 = vpack.c.b16 %v1462, %v1462
      %v1495 = vpack.c.b16 %v1463, %v1463
      %v1496 = vpack.c.b16 %v1464, %v1464
      %v1497 = vpack.c.b16 %v1465, %v1465
      %v1498 = vpack.c.b16 %v1466, %v1466
      %v1499 = vpack.c.b16 %v1467, %v1467
      %v1500 = vpack.c.b16 %v1468, %v1468
      %v1501 = vpack.c.b16 %v1469, %v1469
      %vm1534 = vcmask 60416
      %1535 = vst.msk [vmem:[%s242] sm:$0xf] %vm1534, %v1470
      %1536 = vst.msk [vmem:[%s242 + $0x4] sm:$0xf] %vm1534, %v1471
      %1537 = vst.msk [vmem:[%s242 + $0x8] sm:$0xf] %vm1534, %v1472
      %1538 = vst.msk [vmem:[%s242 + $0xc] sm:$0xf] %vm1534, %v1473
      %1539 = vst.msk [vmem:[%s242 + $0x10] sm:$0xf] %vm1534, %v1474
      %1540 = vst.msk [vmem:[%s242 + $0x14] sm:$0xf] %vm1534, %v1475
      %1541 = vst.msk [vmem:[%s242 + $0x18] sm:$0xf] %vm1534, %v1476
      %1542 = vst.msk [vmem:[%s242 + $0x1c] sm:$0xf] %vm1534, %v1477
      %1543 = vst.msk [vmem:[%s242 + $0x20] sm:$0xf] %vm1534, %v1478
      %1544 = vst.msk [vmem:[%s242 + $0x24] sm:$0xf] %vm1534, %v1479
      %1545 = vst.msk [vmem:[%s242 + $0x28] sm:$0xf] %vm1534, %v1480
      %1546 = vst.msk [vmem:[%s242 + $0x2c] sm:$0xf] %vm1534, %v1481
      %1547 = vst.msk [vmem:[%s242 + $0x30] sm:$0xf] %vm1534, %v1482
      %1548 = vst.msk [vmem:[%s242 + $0x34] sm:$0xf] %vm1534, %v1483
      %1549 = vst.msk [vmem:[%s242 + $0x38] sm:$0xf] %vm1534, %v1484
      %1550 = vst.msk [vmem:[%s242 + $0x3c] sm:$0xf] %vm1534, %v1485
      %1551 = vst.msk [vmem:[%s242 + $0x40] sm:$0xf] %vm1534, %v1486
      %1552 = vst.msk [vmem:[%s242 + $0x44] sm:$0xf] %vm1534, %v1487
      %1553 = vst.msk [vmem:[%s242 + $0x48] sm:$0xf] %vm1534, %v1488
      %1554 = vst.msk [vmem:[%s242 + $0x4c] sm:$0xf] %vm1534, %v1489
      %1555 = vst.msk [vmem:[%s242 + $0x50] sm:$0xf] %vm1534, %v1490
      %1556 = vst.msk [vmem:[%s242 + $0x54] sm:$0xf] %vm1534, %v1491
      %1557 = vst.msk [vmem:[%s242 + $0x58] sm:$0xf] %vm1534, %v1492
      %1558 = vst.msk [vmem:[%s242 + $0x5c] sm:$0xf] %vm1534, %v1493
      %1559 = vst.msk [vmem:[%s242 + $0x60] sm:$0xf] %vm1534, %v1494
      %1560 = vst.msk [vmem:[%s242 + $0x64] sm:$0xf] %vm1534, %v1495
      %1561 = vst.msk [vmem:[%s242 + $0x68] sm:$0xf] %vm1534, %v1496
      %1562 = vst.msk [vmem:[%s242 + $0x6c] sm:$0xf] %vm1534, %v1497
      %1563 = vst.msk [vmem:[%s242 + $0x70] sm:$0xf] %vm1534, %v1498
      %1564 = vst.msk [vmem:[%s242 + $0x74] sm:$0xf] %vm1534, %v1499
      %1565 = vst.msk [vmem:[%s242 + $0x78] sm:$0xf] %vm1534, %v1500
      %1566 = vst.msk [vmem:[%s242 + $0x7c] sm:$0xf] %vm1534, %v1501
      %s1567 = smul.u32 16, %s21
      %p1568 = scmp.lt.s32.totalorder %s20, 1
      %s1569 = scalar_select %p1568, %s20, 1
      %p1570 = scmp.lt.s32.totalorder %s1567, 15
      %s1571 = scalar_select %p1570, %s1567, 15
      %s1572 = smul.addr %s1571, 2
      %s1573 = smul.addr %s1569, 32
      %s1574 = sadd.s32 %s1572, %s1573
      %s1575 = smul.addr %s1574, 4
      %s1576 = scalar_lea.vmem %s2, %s1575
      %p1577 = scmp.lt.s32.totalorder %s20, 1
      %s1578 = scalar_select %p1577, %s20, 1
      %p1579 = scmp.lt.s32.totalorder %s21, 0
      %s1580 = scalar_select %p1579, %s21, 0
      %s1581 = sadd.s32 %s1580, %s1578
      %s1582 = scalar_lea.vmem %s3, %s1581
      %p1583 = scmp.lt.s32.totalorder %s20, 1
      %s1584 = scalar_select %p1583, %s20, 1
      %p1585 = scmp.lt.s32.totalorder %s21, 0
      %s1586 = scalar_select %p1585, %s21, 0
      %s1587 = sadd.s32 %s1586, %s1584
      %s1588 = scalar_lea.vmem %s4, %s1587
      // Predicated region
      $region29: #{cnn_block_forward.2} parent=27 // pred_check
        %p1589 = pneg %p95
      $region30: #{cnn_block_forward.2} parent=27 // pred_check_branch
        %1591 = sbr.rel (%p1589) target = $region32
      $region31: #{cnn_block_forward.2} parent=27 // pred_region
        %s1592 = smul.u32 16, %s21
      $region32: #{cnn_block_forward.2} parent=27 // pred_fallthru
        _
      // Predicated region
      $region33: #{cnn_block_forward.2} parent=27 // pred_check
        %p1593 = pneg %p123
      $region34: #{cnn_block_forward.2} parent=27 // pred_check_branch
        %1595 = sbr.rel (%p1593) target = $region36
      $region35: #{cnn_block_forward.2} parent=27 // pred_region
        _
      $region36: #{cnn_block_forward.2} parent=27 // pred_fallthru
        _
      // Predicated region
      $region37: #{cnn_block_forward.2} parent=27 // pred_check
        %p1596 = pneg %p151
      $region38: #{cnn_block_forward.2} parent=27 // pred_check_branch
        %1598 = sbr.rel (%p1596) target = $region40
      $region39: #{cnn_block_forward.2} parent=27 // pred_region
        _
      $region40: #{cnn_block_forward.2} parent=27 // pred_fallthru
        _
    $region28: #{cnn_block_forward.2} parent=5 // pred_fallthru
      _
    %p1599 = scmp.le.s32.totalorder 2, %s11
    // Predicated region
    $region41: #{cnn_block_forward.2} parent=5 // pred_check
      %p1600 = pneg %p1599
    $region42: #{cnn_block_forward.2} parent=5 // pred_check_branch
      %1602 = sbr.rel (%p1600) target = $region44
    $region43: #{cnn_block_forward.2} parent=5 // pred_region
      %s1603 = ssub.s32 %s11, 2
      // Predicated region
      $region45: #{cnn_block_forward.2} parent=43 // pred_check
        %p1604 = pneg %p101
      $region46: #{cnn_block_forward.2} parent=43 // pred_check_branch
        %1606 = sbr.rel (%p1604) target = $region48
      $region47: #{cnn_block_forward.2} parent=43 // pred_region
        %s1607 = smul.u32 16, %s23
        %p1608 = scmp.lt.s32.totalorder %s22, 1
        %s1609 = scalar_select %p1608, %s22, 1
        %p1610 = scmp.lt.s32.totalorder %s1607, 15
        %s1611 = scalar_select %p1610, %s1607, 15
        %s1612 = smul.addr %s1611, 2
        %s1613 = smul.addr %s1609, 32
        %s1614 = sadd.s32 %s1612, %s1613
        %s1615 = smul.addr %s1614, 4
        %s1616 = scalar_lea.vmem %s2, %s1615
      $region48: #{cnn_block_forward.2} parent=43 // pred_fallthru
        _
      // Predicated region
      $region49: #{cnn_block_forward.2} parent=43 // pred_check
        %p1617 = pneg %p129
      $region50: #{cnn_block_forward.2} parent=43 // pred_check_branch
        %1619 = sbr.rel (%p1617) target = $region52
      $region51: #{cnn_block_forward.2} parent=43 // pred_region
        %p1620 = scmp.lt.s32.totalorder %s22, 1
        %s1621 = scalar_select %p1620, %s22, 1
        %p1622 = scmp.lt.s32.totalorder %s23, 0
        %s1623 = scalar_select %p1622, %s23, 0
        %s1624 = sadd.s32 %s1623, %s1621
        %s1625 = scalar_lea.vmem %s3, %s1624
      $region52: #{cnn_block_forward.2} parent=43 // pred_fallthru
        _
      // Predicated region
      $region53: #{cnn_block_forward.2} parent=43 // pred_check
        %p1626 = pneg %p157
      $region54: #{cnn_block_forward.2} parent=43 // pred_check_branch
        %1628 = sbr.rel (%p1626) target = $region56
      $region55: #{cnn_block_forward.2} parent=43 // pred_region
        %p1629 = scmp.lt.s32.totalorder %s22, 1
        %s1630 = scalar_select %p1629, %s22, 1
        %p1631 = scmp.lt.s32.totalorder %s23, 0
        %s1632 = scalar_select %p1631, %s23, 0
        %s1633 = sadd.s32 %s1632, %s1630
        %s1634 = scalar_lea.vmem %s4, %s1633
      $region56: #{cnn_block_forward.2} parent=43 // pred_fallthru
        _
    $region44: #{cnn_block_forward.2} parent=5 // pred_fallthru
      _
  $region6: #{cnn_block_forward.2} parent=0 // loop_footer
    %s15 = sadd.s32 1, %s11
  $region7: #{cnn_block_forward.2} parent=0 // loop_footer_branch
    %10 = sbr.rel target = $region3
  $region8: #{cnn_block_forward.2} parent=0 // loop_exit
    _

</llo_original>
